<compile_context>
chip_gen: v5e
topology: v5e:2x2
jax: 0.10.0
libtpu: 0.0.40
codegen_flags: <defaults>
</compile_context>

<pallas_src>
import functools

import jax
import jax.numpy as jnp
from jax.experimental import pallas as pl
from jax.experimental.pallas import tpu as pltpu


# ---------------------------------------------------------------------------
# Host-side (static-shape) helpers
# ---------------------------------------------------------------------------
def _cdiv(a, b):
    return -(-a // b)


def _round_up(a, m):
    return _cdiv(a, m) * m


def _pick_group(p, cin, cout):
    """Largest power-of-two group size that divides P and keeps the
    block-diagonal weight / lhs contraction width small."""
    g = 64
    while g > 1 and (p % g != 0 or g * cin > 1024 or g * cout > 4096):
        g //= 2
    return g


def _pick_tile_rows(n_rows, row_bytes, *, min_tiles=1,
                    stream_budget_bytes=8 * 1024 * 1024):
    """Largest row tile whose double-buffered in+out streaming footprint fits
    the budget; a multiple of 8 (sublanes) unless it covers the full extent."""
    tile = max(8, (stream_budget_bytes // (2 * row_bytes)) // 8 * 8)
    if min_tiles > 1:
        # Guarantee >= min_tiles grid steps so megacore (v7x) has work.
        tile = min(tile, max(8, _round_up(_cdiv(n_rows, min_tiles), 8)))
    if tile >= n_rows:
        return n_rows          # full-extent block (allowed regardless of 8|)
    return tile                # multiple of 8; ragged tail masked by Pallas


# ---------------------------------------------------------------------------
# Kernel
# ---------------------------------------------------------------------------
def _grouped_conv1x1_kernel(x_ref, w_ref, b_ref, o_ref):
    # x_ref: (tile_rows, G*Cin)   position-major / channel-minor group rows
    # w_ref: (G*Cin, G*Cout)      block-diagonal kron(I_G, W), grid-invariant
    # b_ref: (1, G*Cout)          bias tiled G times, grid-invariant
    # o_ref: (tile_rows, G*Cout)  lane-dense output rows
    acc = jnp.dot(x_ref[...], w_ref[...], preferred_element_type=jnp.float32)
    acc = acc + b_ref[...].astype(jnp.float32)
    o_ref[...] = acc.astype(o_ref.dtype)


def conv1x1_grouped(x_rows, w_blk, b_blk, *, tile_rows, vmem_limit_bytes):
    """Grouped 1x1 conv.

    x_rows: (N, R, G*Cin)   R = H*W // G, row g = positions g*G..g*G+G-1 (NHWC)
    w_blk:  (G*Cin, G*Cout) block-diagonal weight
    b_blk:  (1, G*Cout)
    returns (N, R, G*Cout)  -- position-major / channel-minor, reshape-free.
    """
    N, R, K = x_rows.shape
    Kw, Cg = w_blk.shape
    assert Kw == K
    n_tiles = _cdiv(R, tile_rows)

    return pl.pallas_call(
        _grouped_conv1x1_kernel,
        out_shape=jax.ShapeDtypeStruct((N, R, Cg), x_rows.dtype),
        grid_spec=pltpu.PrefetchScalarGridSpec(
            num_scalar_prefetch=0,
            grid=(N, n_tiles),
            in_specs=[
                pl.BlockSpec((None, tile_rows, K), lambda n, j: (n, j, 0)),
                # Tiny, grid-invariant blocks: DMA'd once, re-fetch elided.
                pl.BlockSpec((K, Cg), lambda n, j: (0, 0)),
                pl.BlockSpec((1, Cg), lambda n, j: (0, 0)),
            ],
            out_specs=pl.BlockSpec((None, tile_rows, Cg), lambda n, j: (n, j, 0)),
        ),
        compiler_params=pltpu.CompilerParams(
            dimension_semantics=("parallel", "parallel"),
            vmem_limit_bytes=vmem_limit_bytes,
        ),
    )(x_rows, w_blk, b_blk)


# ---------------------------------------------------------------------------
# Forward pass (matches nn.Conv2d(1x1) -> permute(0,2,3,1) -> view(N,-1,10))
# ---------------------------------------------------------------------------
@functools.partial(jax.jit, static_argnames=("num_anchors",))
def landmark_head_forward(x_nchw, w_oihw, b, *, num_anchors=3):
    """x_nchw: (N, Cin, H, W); w_oihw: (A*10, Cin, 1, 1); b: (A*10,).
    Returns (N, H*W*A, 10)."""
    N, Cin, H, W = x_nchw.shape
    Cout = num_anchors * 10
    assert w_oihw.shape[0] == Cout and w_oihw.shape[1] == Cin
    P = H * W

    G = _pick_group(P, Cin, Cout)
    R = P // G
    K = G * Cin
    Cg = G * Cout

    # One NHWC-ordering pass over the (small, Cin-channel) activation; group
    # row g is [pos g*G .. g*G+G-1, each with its Cin channels] (pos-major).
    x_rows = jnp.transpose(x_nchw, (0, 2, 3, 1)).reshape(N, R, K)

    # Block-diagonal weight: w_blk[p*Cin + c, p*Cout + o] = W[c, o].
    w_cio = w_oihw.reshape(Cout, Cin).T.astype(x_nchw.dtype)      # (Cin, Cout)
    w_blk = jnp.kron(jnp.eye(G, dtype=w_cio.dtype), w_cio)        # (K, Cg)
    b_blk = jnp.tile(b, G).reshape(1, Cg)                         # (1, Cg)

    itemsize = jnp.dtype(x_nchw.dtype).itemsize
    row_bytes = (K + Cg) * itemsize
    min_tiles = 2 if (N == 1 and P > 2048) else 1   # keep both v7x TCs busy
    tile_rows = _pick_tile_rows(R, row_bytes, min_tiles=min_tiles)

    out = conv1x1_grouped(x_rows, w_blk, b_blk, tile_rows=tile_rows,
                          vmem_limit_bytes=32 * 1024 * 1024)       # (N, R, Cg)

    # (N, R, G*Cout) is already position-major / channel-minor, so PyTorch's
    # permute(0,2,3,1).contiguous().view(N, -1, 10) is a free reshape.
    return out.reshape(N, P * num_anchors, 10)


def _reference_forward(x_nchw, w_oihw, b, num_anchors=3):
    """Pure-JAX reference replicating the PyTorch semantics exactly."""
    N, Cin, H, W = x_nchw.shape
    Cout = num_anchors * 10
    w2d = w_oihw.reshape(Cout, Cin)
    out = jnp.einsum("nchw,oc->nohw", x_nchw, w2d) + b[None, :, None, None]
    out = jnp.transpose(out, (0, 2, 3, 1))       # NCHW -> NHWC
    return out.reshape(N, -1, 10)


if __name__ == "__main__":
    # Small shapes consistent with the module: inchannels=4, num_anchors=3.
    N, Cin, H, W = 2, 4, 16, 16
    num_anchors = 3
    Cout = num_anchors * 10

    key = jax.random.PRNGKey(0)
    kx, kw, kb = jax.random.split(key, 3)

    x = jax.random.normal(kx, (N, Cin, H, W), dtype=jnp.float32)
    # PyTorch Conv2d(Cin, Cout, 1) weight layout: (Cout, Cin, 1, 1).
    w = jax.random.normal(kw, (Cout, Cin, 1, 1), dtype=jnp.float32) * (
        1.0 / jnp.sqrt(Cin)
    )
    b = jax.random.normal(kb, (Cout,), dtype=jnp.float32) * 0.1

    out = landmark_head_forward(x, w, b, num_anchors=num_anchors)
    out = jax.block_until_ready(out)

    ref = _reference_forward(x, w, b, num_anchors=num_anchors)
    assert out.shape == (N, H * W * num_anchors, 10), out.shape
    assert jnp.allclose(out, ref, atol=1e-5, rtol=1e-5), "mismatch vs reference"

    print("KERNEL_OK")
</pallas_src>

<mosaic_0001>
module attributes {stable_mosaic.version = 11 : i64} {
  func.func @_grouped_conv1x1_kernel(%arg0: i32, %arg1: i32, %arg2: memref<1x4x256xf32, #tpu.memory_space<vmem>>, %arg3: memref<256x1920xf32, #tpu.memory_space<vmem>>, %arg4: memref<1x1920xf32, #tpu.memory_space<vmem>>, %arg5: memref<1x4x1920xf32, #tpu.memory_space<vmem>>) attributes {dimension_semantics = [#tpu.dimension_semantics<parallel>, #tpu.dimension_semantics<parallel>], iteration_bounds = array<i64: 2, 1>, scalar_prefetch = 0 : i64, scratch_operands = 0 : i64, tpu.core_type = #tpu.core_type<tc>, window_params = [{transform_indices = @transform_0, window_bounds = array<i64: 1, 4, 256>}, {pipeline_mode = #tpu.pipeline_mode<synchronous>, transform_indices = @transform_1, window_bounds = array<i64: 256, 1920>}, {pipeline_mode = #tpu.pipeline_mode<synchronous>, transform_indices = @transform_2, window_bounds = array<i64: 1, 1920>}, {transform_indices = @transform_3, window_bounds = array<i64: 1, 4, 1920>}]} {
    %c0 = arith.constant 0 : index
    %c0_0 = arith.constant 0 : index
    %c0_1 = arith.constant 0 : index
    %0 = vector.load %arg2[%c0, %c0_0, %c0_1] : memref<1x4x256xf32, #tpu.memory_space<vmem>>, vector<1x4x256xf32>
    %1 = vector.shape_cast %0 : vector<1x4x256xf32> to vector<4x256xf32>
    %c0_2 = arith.constant 0 : index
    %c0_3 = arith.constant 0 : index
    %2 = vector.load %arg3[%c0_2, %c0_3] : memref<256x1920xf32, #tpu.memory_space<vmem>>, vector<256x1920xf32>
    %cst = arith.constant dense<0.000000e+00> : vector<4x1920xf32>
    %3 = tpu.matmul %1, %2, %cst {dimension_numbers = #tpu.dot_dimension_numbers<[1], [0], [0], [1], [0, 0, 1, 1], [], []>} : vector<4x256xf32>, vector<256x1920xf32>, vector<4x1920xf32> -> vector<4x1920xf32>
    %c0_4 = arith.constant 0 : index
    %c0_5 = arith.constant 0 : index
    %4 = vector.load %arg4[%c0_4, %c0_5] : memref<1x1920xf32, #tpu.memory_space<vmem>>, vector<1x1920xf32>
    %5 = vector.broadcast %4 : vector<1x1920xf32> to vector<4x1920xf32>
    %6 = arith.addf %3, %5 : vector<4x1920xf32>
    %c0_6 = arith.constant 0 : index
    %c0_7 = arith.constant 0 : index
    %c0_8 = arith.constant 0 : index
    %7 = vector.load %arg5[%c0_6, %c0_7, %c0_8] : memref<1x4x1920xf32, #tpu.memory_space<vmem>>, vector<1x4x1920xf32>
    %8 = vector.shape_cast %7 : vector<1x4x1920xf32> to vector<4x1920xf32>
    %9 = vector.shape_cast %6 : vector<4x1920xf32> to vector<1x4x1920xf32>
    tpu.vector_store %arg5[%c0_6, %c0_7, %c0_8], %9 {strides = array<i32>} : memref<1x4x1920xf32, #tpu.memory_space<vmem>>, vector<1x4x1920xf32>,
    return
  }
  func.func @transform_0(%arg0: i32, %arg1: i32) -> (i32, i32, i32) {
    %c0_i32 = arith.constant 0 : i32
    %c0_i32_0 = arith.constant 0 : i32
    return %arg0, %arg1, %c0_i32 : i32, i32, i32
  }
  func.func @transform_1(%arg0: i32, %arg1: i32) -> (i32, i32) {
    %c0_i32 = arith.constant 0 : i32
    %c0_i32_0 = arith.constant 0 : i32
    %c0_i32_1 = arith.constant 0 : i32
    return %c0_i32, %c0_i32_0 : i32, i32
  }
  func.func @transform_2(%arg0: i32, %arg1: i32) -> (i32, i32) {
    %c0_i32 = arith.constant 0 : i32
    %c0_i32_0 = arith.constant 0 : i32
    %c0_i32_1 = arith.constant 0 : i32
    return %c0_i32, %c0_i32_0 : i32, i32
  }
  func.func @transform_3(%arg0: i32, %arg1: i32) -> (i32, i32, i32) {
    %c0_i32 = arith.constant 0 : i32
    %c0_i32_0 = arith.constant 0 : i32
    return %arg0, %arg1, %c0_i32 : i32, i32, i32
  }
}

</mosaic_0001>

<llo_original>
// kernel: tile.8
$region0: #{tile.8}
  #allocation0 [shape = 's32[1]{0}', space=sflag, size = 0x4, scoped, tag = 'scoped memory for tile.8']
  %s0 = inlined_call_operand.vmem [shape: f32[30], index: 0, kind: input, shape index: {}]
  %s1 = inlined_call_operand.vmem [shape: f32[64,30], index: 1, kind: output, shape index: {}]
  // Predicated region
  $region2: #{tile.8} parent=0 // pred_check
    _
  $region3: #{tile.8} parent=0 // pred_check_branch
    %3 = sbr.rel (0) target = $region5
  $region4: #{tile.8} parent=0 // pred_region
    _
  $region5: #{tile.8} parent=0 // pred_fallthru
    _
  %v4 = vld [vmem:[%s0] ss:$0 sm:$0xff]
  %5 = vst [vmem:[%s1] sm:$0xff] %v4
  %s6 = scalar_lea.vmem %s1, 8
  %7 = vst [vmem:[%s6] sm:$0xff] %v4
  %s8 = scalar_lea.vmem %s1, 16
  %9 = vst [vmem:[%s8] sm:$0xff] %v4
  %s10 = scalar_lea.vmem %s1, 24
  %11 = vst [vmem:[%s10] sm:$0xff] %v4
  %s12 = scalar_lea.vmem %s1, 32
  %13 = vst [vmem:[%s12] sm:$0xff] %v4
  %s14 = scalar_lea.vmem %s1, 40
  %15 = vst [vmem:[%s14] sm:$0xff] %v4
  %s16 = scalar_lea.vmem %s1, 48
  %17 = vst [vmem:[%s16] sm:$0xff] %v4
  %s18 = scalar_lea.vmem %s1, 56
  %19 = vst [vmem:[%s18] sm:$0xff] %v4

// kernel: tile.9
$region0: #{tile.9}
  %s0 = inlined_call_operand.vmem [shape: f32[64,30], index: 0, kind: input, shape index: {}]
  %s1 = inlined_call_operand.vmem [shape: f32[1,1920], index: 1, kind: output, shape index: {}]
  $region1: #{tile.9} parent=0
    #allocation0 [shape = 'u8[61440]{0}', space=vmem, size = 0xf000, scoped, tag = 'scoped mem for output reshape']
    %v2 = vld [vmem:[%s0] sm:$0x1]
    %vm3 = vcmask 244736
    %4 = vst.msk [vmem:[#allocation0] sm:$0x1] %vm3, %v2
    %s5 = scalar_lea.vmem %s0, 17
    %v6 = vld [vmem:[%s5] sm:$0x1]
    %s7 = scalar_lea.vmem %s0, 17
    %v8 = vld [vmem:[%s7] sm:$0x1]
    %vm9 = vcmask 15360
    %v10 = vsel %vm9, %v8, %v6
    %11 = vrot.lane.b32.xlu0 %v10, 126
    %v12 = vpop.permute.xlu0 %11
    %vm13 = vcmask 228352
    %s14 = scalar_lea.vmem [#allocation0], 32
    %15 = vst.msk [vmem:[%s14] sm:$0x1] %vm13, %v12
    %vm16 = vcmask 1048560
    %s17 = scalar_lea.vmem [#allocation0], 24
    %18 = vst.msk [vmem:[%s17] sm:$0x1] %vm16, %v12
    %s19 = scalar_lea.vmem %s0, 34
    %v20 = vld [vmem:[%s19] sm:$0x1]
    %s21 = scalar_lea.vmem %s0, 34
    %v22 = vld [vmem:[%s21] sm:$0x1]
    %vm23 = vcmask 31744
    %v24 = vsel %vm23, %v22, %v20
    %25 = vrot.lane.b32.xlu0 %v24, 124
    %v26 = vpop.permute.xlu0 %25
    %vm27 = vcmask 211968
    %s28 = scalar_lea.vmem [#allocation0], 64
    %29 = vst.msk [vmem:[%s28] sm:$0x1] %vm27, %v26
    %vm30 = vcmask 1048544
    %s31 = scalar_lea.vmem [#allocation0], 56
    %32 = vst.msk [vmem:[%s31] sm:$0x1] %vm30, %v26
    %s33 = scalar_lea.vmem %s0, 51
    %v34 = vld [vmem:[%s33] sm:$0x1]
    %s35 = scalar_lea.vmem %s0, 51
    %v36 = vld [vmem:[%s35] sm:$0x1]
    %vm37 = vcmask 48128
    %v38 = vsel %vm37, %v36, %v34
    %39 = vrot.lane.b32.xlu0 %v38, 122
    %v40 = vpop.permute.xlu0 %39
    %vm41 = vcmask 195584
    %s42 = scalar_lea.vmem [#allocation0], 96
    %43 = vst.msk [vmem:[%s42] sm:$0x1] %vm41, %v40
    %vm44 = vcmask 1048528
    %s45 = scalar_lea.vmem [#allocation0], 88
    %46 = vst.msk [vmem:[%s45] sm:$0x1] %vm44, %v40
    %s47 = scalar_lea.vmem %s0, 4
    %v48 = vld [vmem:[%s47] sm:$0x1]
    %s49 = scalar_lea.vmem %s0, 4
    %v50 = vld [vmem:[%s49] sm:$0x1]
    %vm51 = vcmask 64512
    %v52 = vsel %vm51, %v50, %v48
    %53 = vrot.lane.b32.xlu0 %v52, 120
    %v54 = vpop.permute.xlu0 %53
    %vm55 = vcmask 179200
    %s56 = scalar_lea.vmem [#allocation0], 8
    %57 = vst.msk [vmem:[%s56] sm:$0x1] %vm55, %v54
    %vm58 = vcmask 1048512
    %59 = vst.msk [vmem:[#allocation0] sm:$0x1] %vm58, %v54
    %s60 = scalar_lea.vmem %s0, 21
    %v61 = vld [vmem:[%s60] sm:$0x1]
    %s62 = scalar_lea.vmem %s0, 21
    %v63 = vld [vmem:[%s62] sm:$0x1]
    %vm64 = vcmask 80896
    %v65 = vsel %vm64, %v63, %v61
    %66 = vrot.lane.b32.xlu0 %v65, 118
    %v67 = vpop.permute.xlu0 %66
    %vm68 = vcmask 162816
    %s69 = scalar_lea.vmem [#allocation0], 40
    %70 = vst.msk [vmem:[%s69] sm:$0x1] %vm68, %v67
    %vm71 = vcmask 1048496
    %s72 = scalar_lea.vmem [#allocation0], 32
    %73 = vst.msk [vmem:[%s72] sm:$0x1] %vm71, %v67
    %s74 = scalar_lea.vmem %s0, 38
    %v75 = vld [vmem:[%s74] sm:$0x1]
    %s76 = scalar_lea.vmem %s0, 38
    %v77 = vld [vmem:[%s76] sm:$0x1]
    %vm78 = vcmask 97280
    %v79 = vsel %vm78, %v77, %v75
    %80 = vrot.lane.b32.xlu0 %v79, 116
    %v81 = vpop.permute.xlu0 %80
    %vm82 = vcmask 146432
    %s83 = scalar_lea.vmem [#allocation0], 72
    %84 = vst.msk [vmem:[%s83] sm:$0x1] %vm82, %v81
    %vm85 = vcmask 1048480
    %s86 = scalar_lea.vmem [#allocation0], 64
    %87 = vst.msk [vmem:[%s86] sm:$0x1] %vm85, %v81
    %s88 = scalar_lea.vmem %s0, 55
    %v89 = vld [vmem:[%s88] sm:$0x1]
    %s90 = scalar_lea.vmem %s0, 55
    %v91 = vld [vmem:[%s90] sm:$0x1]
    %vm92 = vcmask 113664
    %v93 = vsel %vm92, %v91, %v89
    %94 = vrot.lane.b32.xlu0 %v93, 114
    %v95 = vpop.permute.xlu0 %94
    %vm96 = vcmask 130048
    %s97 = scalar_lea.vmem [#allocation0], 104
    %98 = vst.msk [vmem:[%s97] sm:$0x1] %vm96, %v95
    %vm99 = vcmask 1048464
    %s100 = scalar_lea.vmem [#allocation0], 96
    %101 = vst.msk [vmem:[%s100] sm:$0x1] %vm99, %v95
    %s102 = scalar_lea.vmem %s0, 8
    %v103 = vld [vmem:[%s102] sm:$0x1]
    %s104 = scalar_lea.vmem %s0, 8
    %v105 = vld [vmem:[%s104] sm:$0x1]
    %vm106 = vcmask 130048
    %v107 = vsel %vm106, %v105, %v103
    %108 = vrot.lane.b32.xlu0 %v107, 112
    %v109 = vpop.permute.xlu0 %108
    %vm110 = vcmask 113664
    %s111 = scalar_lea.vmem [#allocation0], 16
    %112 = vst.msk [vmem:[%s111] sm:$0x1] %vm110, %v109
    %vm113 = vcmask 1048448
    %s114 = scalar_lea.vmem [#allocation0], 8
    %115 = vst.msk [vmem:[%s114] sm:$0x1] %vm113, %v109
    %s116 = scalar_lea.vmem %s0, 25
    %v117 = vld [vmem:[%s116] sm:$0x1]
    %s118 = scalar_lea.vmem %s0, 25
    %v119 = vld [vmem:[%s118] sm:$0x1]
    %vm120 = vcmask 146432
    %v121 = vsel %vm120, %v119, %v117
    %122 = vrot.lane.b32.xlu0 %v121, 110
    %v123 = vpop.permute.xlu0 %122
    %vm124 = vcmask 97280
    %s125 = scalar_lea.vmem [#allocation0], 48
    %126 = vst.msk [vmem:[%s125] sm:$0x1] %vm124, %v123
    %vm127 = vcmask 1048432
    %s128 = scalar_lea.vmem [#allocation0], 40
    %129 = vst.msk [vmem:[%s128] sm:$0x1] %vm127, %v123
    %s130 = scalar_lea.vmem %s0, 42
    %v131 = vld [vmem:[%s130] sm:$0x1]
    %s132 = scalar_lea.vmem %s0, 42
    %v133 = vld [vmem:[%s132] sm:$0x1]
    %vm134 = vcmask 162816
    %v135 = vsel %vm134, %v133, %v131
    %136 = vrot.lane.b32.xlu0 %v135, 108
    %v137 = vpop.permute.xlu0 %136
    %vm138 = vcmask 80896
    %s139 = scalar_lea.vmem [#allocation0], 80
    %140 = vst.msk [vmem:[%s139] sm:$0x1] %vm138, %v137
    %vm141 = vcmask 1048416
    %s142 = scalar_lea.vmem [#allocation0], 72
    %143 = vst.msk [vmem:[%s142] sm:$0x1] %vm141, %v137
    %s144 = scalar_lea.vmem %s0, 59
    %v145 = vld [vmem:[%s144] sm:$0x1]
    %s146 = scalar_lea.vmem %s0, 59
    %v147 = vld [vmem:[%s146] sm:$0x1]
    %vm148 = vcmask 179200
    %v149 = vsel %vm148, %v147, %v145
    %150 = vrot.lane.b32.xlu0 %v149, 106
    %v151 = vpop.permute.xlu0 %150
    %vm152 = vcmask 64512
    %s153 = scalar_lea.vmem [#allocation0], 112
    %154 = vst.msk [vmem:[%s153] sm:$0x1] %vm152, %v151
    %vm155 = vcmask 1048400
    %s156 = scalar_lea.vmem [#allocation0], 104
    %157 = vst.msk [vmem:[%s156] sm:$0x1] %vm155, %v151
    %s158 = scalar_lea.vmem %s0, 12
    %v159 = vld [vmem:[%s158] sm:$0x1]
    %s160 = scalar_lea.vmem %s0, 12
    %v161 = vld [vmem:[%s160] sm:$0x1]
    %vm162 = vcmask 195584
    %v163 = vsel %vm162, %v161, %v159
    %164 = vrot.lane.b32.xlu0 %v163, 104
    %v165 = vpop.permute.xlu0 %164
    %vm166 = vcmask 48128
    %s167 = scalar_lea.vmem [#allocation0], 24
    %168 = vst.msk [vmem:[%s167] sm:$0x1] %vm166, %v165
    %vm169 = vcmask 1048384
    %s170 = scalar_lea.vmem [#allocation0], 16
    %171 = vst.msk [vmem:[%s170] sm:$0x1] %vm169, %v165
    %s172 = scalar_lea.vmem %s0, 29
    %v173 = vld [vmem:[%s172] sm:$0x1]
    %s174 = scalar_lea.vmem %s0, 29
    %v175 = vld [vmem:[%s174] sm:$0x1]
    %vm176 = vcmask 211968
    %v177 = vsel %vm176, %v175, %v173
    %178 = vrot.lane.b32.xlu0 %v177, 102
    %v179 = vpop.permute.xlu0 %178
    %vm180 = vcmask 31744
    %s181 = scalar_lea.vmem [#allocation0], 56
    %182 = vst.msk [vmem:[%s181] sm:$0x1] %vm180, %v179
    %vm183 = vcmask 1048368
    %s184 = scalar_lea.vmem [#allocation0], 48
    %185 = vst.msk [vmem:[%s184] sm:$0x1] %vm183, %v179
    %s186 = scalar_lea.vmem %s0, 46
    %v187 = vld [vmem:[%s186] sm:$0x1]
    %s188 = scalar_lea.vmem %s0, 46
    %v189 = vld [vmem:[%s188] sm:$0x1]
    %vm190 = vcmask 228352
    %v191 = vsel %vm190, %v189, %v187
    %192 = vrot.lane.b32.xlu0 %v191, 100
    %v193 = vpop.permute.xlu0 %192
    %vm194 = vcmask 15360
    %s195 = scalar_lea.vmem [#allocation0], 88
    %196 = vst.msk [vmem:[%s195] sm:$0x1] %vm194, %v193
    %vm197 = vcmask 1048352
    %s198 = scalar_lea.vmem [#allocation0], 80
    %199 = vst.msk [vmem:[%s198] sm:$0x1] %vm197, %v193
    %s200 = scalar_lea.vmem %s0, 63
    %v201 = vld [vmem:[%s200] sm:$0x1]
    %202 = vrot.lane.b32.xlu0 %v201, 98
    %v203 = vpop.permute.xlu0 %202
    %vm204 = vcmask 1048336
    %s205 = scalar_lea.vmem [#allocation0], 112
    %206 = vst.msk [vmem:[%s205] sm:$0x1] %vm204, %v203
    %s207 = scalar_lea.vmem %s0, 16
    %v208 = vld [vmem:[%s207] sm:$0x1]
    %209 = vrot.lane.b32.xlu0 %v208, 96
    %v210 = vpop.permute.xlu0 %209
    %vm211 = vcmask 1031936
    %s212 = scalar_lea.vmem [#allocation0], 24
    %213 = vst.msk [vmem:[%s212] sm:$0x1] %vm211, %v210
    %s214 = scalar_lea.vmem %s0, 33
    %v215 = vld [vmem:[%s214] sm:$0x1]
    %216 = vrot.lane.b32.xlu0 %v215, 94
    %v217 = vpop.permute.xlu0 %216
    %vm218 = vcmask 1015536
    %s219 = scalar_lea.vmem [#allocation0], 56
    %220 = vst.msk [vmem:[%s219] sm:$0x1] %vm218, %v217
    %s221 = scalar_lea.vmem %s0, 50
    %v222 = vld [vmem:[%s221] sm:$0x1]
    %223 = vrot.lane.b32.xlu0 %v222, 92
    %v224 = vpop.permute.xlu0 %223
    %vm225 = vcmask 999136
    %s226 = scalar_lea.vmem [#allocation0], 88
    %227 = vst.msk [vmem:[%s226] sm:$0x1] %vm225, %v224
    %s228 = scalar_lea.vmem %s0, 3
    %v229 = vld [vmem:[%s228] sm:$0x1]
    %230 = vrot.lane.b32.xlu0 %v229, 90
    %v231 = vpop.permute.xlu0 %230
    %vm232 = vcmask 982736
    %233 = vst.msk [vmem:[#allocation0] sm:$0x1] %vm232, %v231
    %s234 = scalar_lea.vmem %s0, 20
    %v235 = vld [vmem:[%s234] sm:$0x1]
    %236 = vrot.lane.b32.xlu0 %v235, 88
    %v237 = vpop.permute.xlu0 %236
    %vm238 = vcmask 966336
    %s239 = scalar_lea.vmem [#allocation0], 32
    %240 = vst.msk [vmem:[%s239] sm:$0x1] %vm238, %v237
    %s241 = scalar_lea.vmem %s0, 37
    %v242 = vld [vmem:[%s241] sm:$0x1]
    %243 = vrot.lane.b32.xlu0 %v242, 86
    %v244 = vpop.permute.xlu0 %243
    %vm245 = vcmask 949936
    %s246 = scalar_lea.vmem [#allocation0], 64
    %247 = vst.msk [vmem:[%s246] sm:$0x1] %vm245, %v244
    %s248 = scalar_lea.vmem %s0, 54
    %v249 = vld [vmem:[%s248] sm:$0x1]
    %250 = vrot.lane.b32.xlu0 %v249, 84
    %v251 = vpop.permute.xlu0 %250
    %vm252 = vcmask 933536
    %s253 = scalar_lea.vmem [#allocation0], 96
    %254 = vst.msk [vmem:[%s253] sm:$0x1] %vm252, %v251
    %s255 = scalar_lea.vmem %s0, 7
    %v256 = vld [vmem:[%s255] sm:$0x1]
    %257 = vrot.lane.b32.xlu0 %v256, 82
    %v258 = vpop.permute.xlu0 %257
    %vm259 = vcmask 917136
    %s260 = scalar_lea.vmem [#allocation0], 8
    %261 = vst.msk [vmem:[%s260] sm:$0x1] %vm259, %v258
    %s262 = scalar_lea.vmem %s0, 24
    %v263 = vld [vmem:[%s262] sm:$0x1]
    %264 = vrot.lane.b32.xlu0 %v263, 80
    %v265 = vpop.permute.xlu0 %264
    %vm266 = vcmask 900736
    %s267 = scalar_lea.vmem [#allocation0], 40
    %268 = vst.msk [vmem:[%s267] sm:$0x1] %vm266, %v265
    %s269 = scalar_lea.vmem %s0, 41
    %v270 = vld [vmem:[%s269] sm:$0x1]
    %271 = vrot.lane.b32.xlu0 %v270, 78
    %v272 = vpop.permute.xlu0 %271
    %vm273 = vcmask 884336
    %s274 = scalar_lea.vmem [#allocation0], 72
    %275 = vst.msk [vmem:[%s274] sm:$0x1] %vm273, %v272
    %s276 = scalar_lea.vmem %s0, 58
    %v277 = vld [vmem:[%s276] sm:$0x1]
    %278 = vrot.lane.b32.xlu0 %v277, 76
    %v279 = vpop.permute.xlu0 %278
    %vm280 = vcmask 867936
    %s281 = scalar_lea.vmem [#allocation0], 104
    %282 = vst.msk [vmem:[%s281] sm:$0x1] %vm280, %v279
    %s283 = scalar_lea.vmem %s0, 11
    %v284 = vld [vmem:[%s283] sm:$0x1]
    %285 = vrot.lane.b32.xlu0 %v284, 74
    %v286 = vpop.permute.xlu0 %285
    %vm287 = vcmask 851536
    %s288 = scalar_lea.vmem [#allocation0], 16
    %289 = vst.msk [vmem:[%s288] sm:$0x1] %vm287, %v286
    %s290 = scalar_lea.vmem %s0, 28
    %v291 = vld [vmem:[%s290] sm:$0x1]
    %292 = vrot.lane.b32.xlu0 %v291, 72
    %v293 = vpop.permute.xlu0 %292
    %vm294 = vcmask 835136
    %s295 = scalar_lea.vmem [#allocation0], 48
    %296 = vst.msk [vmem:[%s295] sm:$0x1] %vm294, %v293
    %s297 = scalar_lea.vmem %s0, 45
    %v298 = vld [vmem:[%s297] sm:$0x1]
    %299 = vrot.lane.b32.xlu0 %v298, 70
    %v300 = vpop.permute.xlu0 %299
    %vm301 = vcmask 818736
    %s302 = scalar_lea.vmem [#allocation0], 80
    %303 = vst.msk [vmem:[%s302] sm:$0x1] %vm301, %v300
    %s304 = scalar_lea.vmem %s0, 62
    %v305 = vld [vmem:[%s304] sm:$0x1]
    %306 = vrot.lane.b32.xlu0 %v305, 68
    %v307 = vpop.permute.xlu0 %306
    %vm308 = vcmask 802336
    %s309 = scalar_lea.vmem [#allocation0], 112
    %310 = vst.msk [vmem:[%s309] sm:$0x1] %vm308, %v307
    %s311 = scalar_lea.vmem %s0, 15
    %v312 = vld [vmem:[%s311] sm:$0x1]
    %313 = vrot.lane.b32.xlu0 %v312, 66
    %v314 = vpop.permute.xlu0 %313
    %vm315 = vcmask 785936
    %s316 = scalar_lea.vmem [#allocation0], 24
    %317 = vst.msk [vmem:[%s316] sm:$0x1] %vm315, %v314
    %s318 = scalar_lea.vmem %s0, 32
    %v319 = vld [vmem:[%s318] sm:$0x1]
    %320 = vrot.lane.b32.xlu0 %v319, 64
    %v321 = vpop.permute.xlu0 %320
    %vm322 = vcmask 769536
    %s323 = scalar_lea.vmem [#allocation0], 56
    %324 = vst.msk [vmem:[%s323] sm:$0x1] %vm322, %v321
    %s325 = scalar_lea.vmem %s0, 49
    %v326 = vld [vmem:[%s325] sm:$0x1]
    %327 = vrot.lane.b32.xlu0 %v326, 62
    %v328 = vpop.permute.xlu0 %327
    %vm329 = vcmask 753136
    %s330 = scalar_lea.vmem [#allocation0], 88
    %331 = vst.msk [vmem:[%s330] sm:$0x1] %vm329, %v328
    %s332 = scalar_lea.vmem %s0, 2
    %v333 = vld [vmem:[%s332] sm:$0x1]
    %334 = vrot.lane.b32.xlu0 %v333, 60
    %v335 = vpop.permute.xlu0 %334
    %vm336 = vcmask 736736
    %337 = vst.msk [vmem:[#allocation0] sm:$0x1] %vm336, %v335
    %s338 = scalar_lea.vmem %s0, 19
    %v339 = vld [vmem:[%s338] sm:$0x1]
    %340 = vrot.lane.b32.xlu0 %v339, 58
    %v341 = vpop.permute.xlu0 %340
    %vm342 = vcmask 720336
    %s343 = scalar_lea.vmem [#allocation0], 32
    %344 = vst.msk [vmem:[%s343] sm:$0x1] %vm342, %v341
    %s345 = scalar_lea.vmem %s0, 36
    %v346 = vld [vmem:[%s345] sm:$0x1]
    %347 = vrot.lane.b32.xlu0 %v346, 56
    %v348 = vpop.permute.xlu0 %347
    %vm349 = vcmask 703936
    %s350 = scalar_lea.vmem [#allocation0], 64
    %351 = vst.msk [vmem:[%s350] sm:$0x1] %vm349, %v348
    %s352 = scalar_lea.vmem %s0, 53
    %v353 = vld [vmem:[%s352] sm:$0x1]
    %354 = vrot.lane.b32.xlu0 %v353, 54
    %v355 = vpop.permute.xlu0 %354
    %vm356 = vcmask 687536
    %s357 = scalar_lea.vmem [#allocation0], 96
    %358 = vst.msk [vmem:[%s357] sm:$0x1] %vm356, %v355
    %s359 = scalar_lea.vmem %s0, 6
    %v360 = vld [vmem:[%s359] sm:$0x1]
    %361 = vrot.lane.b32.xlu0 %v360, 52
    %v362 = vpop.permute.xlu0 %361
    %vm363 = vcmask 671136
    %s364 = scalar_lea.vmem [#allocation0], 8
    %365 = vst.msk [vmem:[%s364] sm:$0x1] %vm363, %v362
    %s366 = scalar_lea.vmem %s0, 23
    %v367 = vld [vmem:[%s366] sm:$0x1]
    %368 = vrot.lane.b32.xlu0 %v367, 50
    %v369 = vpop.permute.xlu0 %368
    %vm370 = vcmask 654736
    %s371 = scalar_lea.vmem [#allocation0], 40
    %372 = vst.msk [vmem:[%s371] sm:$0x1] %vm370, %v369
    %s373 = scalar_lea.vmem %s0, 40
    %v374 = vld [vmem:[%s373] sm:$0x1]
    %375 = vrot.lane.b32.xlu0 %v374, 48
    %v376 = vpop.permute.xlu0 %375
    %vm377 = vcmask 638336
    %s378 = scalar_lea.vmem [#allocation0], 72
    %379 = vst.msk [vmem:[%s378] sm:$0x1] %vm377, %v376
    %s380 = scalar_lea.vmem %s0, 57
    %v381 = vld [vmem:[%s380] sm:$0x1]
    %382 = vrot.lane.b32.xlu0 %v381, 46
    %v383 = vpop.permute.xlu0 %382
    %vm384 = vcmask 621936
    %s385 = scalar_lea.vmem [#allocation0], 104
    %386 = vst.msk [vmem:[%s385] sm:$0x1] %vm384, %v383
    %s387 = scalar_lea.vmem %s0, 10
    %v388 = vld [vmem:[%s387] sm:$0x1]
    %389 = vrot.lane.b32.xlu0 %v388, 44
    %v390 = vpop.permute.xlu0 %389
    %vm391 = vcmask 605536
    %s392 = scalar_lea.vmem [#allocation0], 16
    %393 = vst.msk [vmem:[%s392] sm:$0x1] %vm391, %v390
    %s394 = scalar_lea.vmem %s0, 27
    %v395 = vld [vmem:[%s394] sm:$0x1]
    %396 = vrot.lane.b32.xlu0 %v395, 42
    %v397 = vpop.permute.xlu0 %396
    %vm398 = vcmask 589136
    %s399 = scalar_lea.vmem [#allocation0], 48
    %400 = vst.msk [vmem:[%s399] sm:$0x1] %vm398, %v397
    %s401 = scalar_lea.vmem %s0, 44
    %v402 = vld [vmem:[%s401] sm:$0x1]
    %403 = vrot.lane.b32.xlu0 %v402, 40
    %v404 = vpop.permute.xlu0 %403
    %vm405 = vcmask 572736
    %s406 = scalar_lea.vmem [#allocation0], 80
    %407 = vst.msk [vmem:[%s406] sm:$0x1] %vm405, %v404
    %s408 = scalar_lea.vmem %s0, 61
    %v409 = vld [vmem:[%s408] sm:$0x1]
    %410 = vrot.lane.b32.xlu0 %v409, 38
    %v411 = vpop.permute.xlu0 %410
    %vm412 = vcmask 556336
    %s413 = scalar_lea.vmem [#allocation0], 112
    %414 = vst.msk [vmem:[%s413] sm:$0x1] %vm412, %v411
    %s415 = scalar_lea.vmem %s0, 14
    %v416 = vld [vmem:[%s415] sm:$0x1]
    %417 = vrot.lane.b32.xlu0 %v416, 36
    %v418 = vpop.permute.xlu0 %417
    %vm419 = vcmask 539936
    %s420 = scalar_lea.vmem [#allocation0], 24
    %421 = vst.msk [vmem:[%s420] sm:$0x1] %vm419, %v418
    %s422 = scalar_lea.vmem %s0, 31
    %v423 = vld [vmem:[%s422] sm:$0x1]
    %424 = vrot.lane.b32.xlu0 %v423, 34
    %v425 = vpop.permute.xlu0 %424
    %vm426 = vcmask 523536
    %s427 = scalar_lea.vmem [#allocation0], 56
    %428 = vst.msk [vmem:[%s427] sm:$0x1] %vm426, %v425
    %s429 = scalar_lea.vmem %s0, 48
    %v430 = vld [vmem:[%s429] sm:$0x1]
    %431 = vrot.lane.b32.xlu0 %v430, 32
    %v432 = vpop.permute.xlu0 %431
    %vm433 = vcmask 507136
    %s434 = scalar_lea.vmem [#allocation0], 88
    %435 = vst.msk [vmem:[%s434] sm:$0x1] %vm433, %v432
    %s436 = scalar_lea.vmem %s0, 1
    %v437 = vld [vmem:[%s436] sm:$0x1]
    %438 = vrot.lane.b32.xlu0 %v437, 30
    %v439 = vpop.permute.xlu0 %438
    %vm440 = vcmask 490736
    %441 = vst.msk [vmem:[#allocation0] sm:$0x1] %vm440, %v439
    %s442 = scalar_lea.vmem %s0, 18
    %v443 = vld [vmem:[%s442] sm:$0x1]
    %444 = vrot.lane.b32.xlu0 %v443, 28
    %v445 = vpop.permute.xlu0 %444
    %vm446 = vcmask 474336
    %s447 = scalar_lea.vmem [#allocation0], 32
    %448 = vst.msk [vmem:[%s447] sm:$0x1] %vm446, %v445
    %s449 = scalar_lea.vmem %s0, 35
    %v450 = vld [vmem:[%s449] sm:$0x1]
    %451 = vrot.lane.b32.xlu0 %v450, 26
    %v452 = vpop.permute.xlu0 %451
    %vm453 = vcmask 457936
    %s454 = scalar_lea.vmem [#allocation0], 64
    %455 = vst.msk [vmem:[%s454] sm:$0x1] %vm453, %v452
    %s456 = scalar_lea.vmem %s0, 52
    %v457 = vld [vmem:[%s456] sm:$0x1]
    %458 = vrot.lane.b32.xlu0 %v457, 24
    %v459 = vpop.permute.xlu0 %458
    %vm460 = vcmask 441536
    %s461 = scalar_lea.vmem [#allocation0], 96
    %462 = vst.msk [vmem:[%s461] sm:$0x1] %vm460, %v459
    %s463 = scalar_lea.vmem %s0, 5
    %v464 = vld [vmem:[%s463] sm:$0x1]
    %465 = vrot.lane.b32.xlu0 %v464, 22
    %v466 = vpop.permute.xlu0 %465
    %vm467 = vcmask 425136
    %s468 = scalar_lea.vmem [#allocation0], 8
    %469 = vst.msk [vmem:[%s468] sm:$0x1] %vm467, %v466
    %s470 = scalar_lea.vmem %s0, 22
    %v471 = vld [vmem:[%s470] sm:$0x1]
    %472 = vrot.lane.b32.xlu0 %v471, 20
    %v473 = vpop.permute.xlu0 %472
    %vm474 = vcmask 408736
    %s475 = scalar_lea.vmem [#allocation0], 40
    %476 = vst.msk [vmem:[%s475] sm:$0x1] %vm474, %v473
    %s477 = scalar_lea.vmem %s0, 39
    %v478 = vld [vmem:[%s477] sm:$0x1]
    %479 = vrot.lane.b32.xlu0 %v478, 18
    %v480 = vpop.permute.xlu0 %479
    %vm481 = vcmask 392336
    %s482 = scalar_lea.vmem [#allocation0], 72
    %483 = vst.msk [vmem:[%s482] sm:$0x1] %vm481, %v480
    %s484 = scalar_lea.vmem %s0, 56
    %v485 = vld [vmem:[%s484] sm:$0x1]
    %486 = vrot.lane.b32.xlu0 %v485, 16
    %v487 = vpop.permute.xlu0 %486
    %vm488 = vcmask 375936
    %s489 = scalar_lea.vmem [#allocation0], 104
    %490 = vst.msk [vmem:[%s489] sm:$0x1] %vm488, %v487
    %s491 = scalar_lea.vmem %s0, 9
    %v492 = vld [vmem:[%s491] sm:$0x1]
    %493 = vrot.lane.b32.xlu0 %v492, 14
    %v494 = vpop.permute.xlu0 %493
    %vm495 = vcmask 359536
    %s496 = scalar_lea.vmem [#allocation0], 16
    %497 = vst.msk [vmem:[%s496] sm:$0x1] %vm495, %v494
    %s498 = scalar_lea.vmem %s0, 26
    %v499 = vld [vmem:[%s498] sm:$0x1]
    %500 = vrot.lane.b32.xlu0 %v499, 12
    %v501 = vpop.permute.xlu0 %500
    %vm502 = vcmask 343136
    %s503 = scalar_lea.vmem [#allocation0], 48
    %504 = vst.msk [vmem:[%s503] sm:$0x1] %vm502, %v501
    %s505 = scalar_lea.vmem %s0, 43
    %v506 = vld [vmem:[%s505] sm:$0x1]
    %507 = vrot.lane.b32.xlu0 %v506, 10
    %v508 = vpop.permute.xlu0 %507
    %vm509 = vcmask 326736
    %s510 = scalar_lea.vmem [#allocation0], 80
    %511 = vst.msk [vmem:[%s510] sm:$0x1] %vm509, %v508
    %s512 = scalar_lea.vmem %s0, 60
    %v513 = vld [vmem:[%s512] sm:$0x1]
    %514 = vrot.lane.b32.xlu0 %v513, 8
    %v515 = vpop.permute.xlu0 %514
    %vm516 = vcmask 310336
    %s517 = scalar_lea.vmem [#allocation0], 112
    %518 = vst.msk [vmem:[%s517] sm:$0x1] %vm516, %v515
    %s519 = scalar_lea.vmem %s0, 13
    %v520 = vld [vmem:[%s519] sm:$0x1]
    %521 = vrot.lane.b32.xlu0 %v520, 6
    %v522 = vpop.permute.xlu0 %521
    %vm523 = vcmask 293936
    %s524 = scalar_lea.vmem [#allocation0], 24
    %525 = vst.msk [vmem:[%s524] sm:$0x1] %vm523, %v522
    %s526 = scalar_lea.vmem %s0, 30
    %v527 = vld [vmem:[%s526] sm:$0x1]
    %528 = vrot.lane.b32.xlu0 %v527, 4
    %v529 = vpop.permute.xlu0 %528
    %vm530 = vcmask 277536
    %s531 = scalar_lea.vmem [#allocation0], 56
    %532 = vst.msk [vmem:[%s531] sm:$0x1] %vm530, %v529
    %s533 = scalar_lea.vmem %s0, 47
    %v534 = vld [vmem:[%s533] sm:$0x1]
    %535 = vrot.lane.b32.xlu0 %v534, 2
    %v536 = vpop.permute.xlu0 %535
    %vm537 = vcmask 261136
    %s538 = scalar_lea.vmem [#allocation0], 88
    %539 = vst.msk [vmem:[%s538] sm:$0x1] %vm537, %v536
    %s541 = ssub.s32 2, 1
    %v542 = vld [vmem:[#allocation0] sm:%s541]
    %s544 = ssub.s32 2, 1
    %545 = vst [vmem:[%s1] sm:%s544] %v542
    %s546 = scalar_lea.vmem [#allocation0], 8
    %v547 = vld [vmem:[%s546] sm:%s541]
    %s549 = ssub.s32 2, 1
    %s550 = scalar_lea.vmem %s1, 1
    %551 = vst [vmem:[%s550] sm:%s549] %v547
    %s552 = scalar_lea.vmem [#allocation0], 16
    %v553 = vld [vmem:[%s552] sm:%s541]
    %s555 = ssub.s32 2, 1
    %s556 = scalar_lea.vmem %s1, 2
    %557 = vst [vmem:[%s556] sm:%s555] %v553
    %s558 = scalar_lea.vmem [#allocation0], 24
    %v559 = vld [vmem:[%s558] sm:%s541]
    %s561 = ssub.s32 2, 1
    %s562 = scalar_lea.vmem %s1, 3
    %563 = vst [vmem:[%s562] sm:%s561] %v559
    %s564 = scalar_lea.vmem [#allocation0], 32
    %v565 = vld [vmem:[%s564] sm:%s541]
    %s567 = ssub.s32 2, 1
    %s568 = scalar_lea.vmem %s1, 4
    %569 = vst [vmem:[%s568] sm:%s567] %v565
    %s570 = scalar_lea.vmem [#allocation0], 40
    %v571 = vld [vmem:[%s570] sm:%s541]
    %s573 = ssub.s32 2, 1
    %s574 = scalar_lea.vmem %s1, 5
    %575 = vst [vmem:[%s574] sm:%s573] %v571
    %s576 = scalar_lea.vmem [#allocation0], 48
    %v577 = vld [vmem:[%s576] sm:%s541]
    %s579 = ssub.s32 2, 1
    %s580 = scalar_lea.vmem %s1, 6
    %581 = vst [vmem:[%s580] sm:%s579] %v577
    %s582 = scalar_lea.vmem [#allocation0], 56
    %v583 = vld [vmem:[%s582] sm:%s541]
    %s585 = ssub.s32 2, 1
    %s586 = scalar_lea.vmem %s1, 7
    %587 = vst [vmem:[%s586] sm:%s585] %v583
    %s588 = scalar_lea.vmem [#allocation0], 64
    %v589 = vld [vmem:[%s588] sm:%s541]
    %s591 = ssub.s32 2, 1
    %s592 = scalar_lea.vmem %s1, 8
    %593 = vst [vmem:[%s592] sm:%s591] %v589
    %s594 = scalar_lea.vmem [#allocation0], 72
    %v595 = vld [vmem:[%s594] sm:%s541]
    %s597 = ssub.s32 2, 1
    %s598 = scalar_lea.vmem %s1, 9
    %599 = vst [vmem:[%s598] sm:%s597] %v595
    %s600 = scalar_lea.vmem [#allocation0], 80
    %v601 = vld [vmem:[%s600] sm:%s541]
    %s603 = ssub.s32 2, 1
    %s604 = scalar_lea.vmem %s1, 10
    %605 = vst [vmem:[%s604] sm:%s603] %v601
    %s606 = scalar_lea.vmem [#allocation0], 88
    %v607 = vld [vmem:[%s606] sm:%s541]
    %s609 = ssub.s32 2, 1
    %s610 = scalar_lea.vmem %s1, 11
    %611 = vst [vmem:[%s610] sm:%s609] %v607
    %s612 = scalar_lea.vmem [#allocation0], 96
    %v613 = vld [vmem:[%s612] sm:%s541]
    %s615 = ssub.s32 2, 1
    %s616 = scalar_lea.vmem %s1, 12
    %617 = vst [vmem:[%s616] sm:%s615] %v613
    %s618 = scalar_lea.vmem [#allocation0], 104
    %v619 = vld [vmem:[%s618] sm:%s541]
    %s621 = ssub.s32 2, 1
    %s622 = scalar_lea.vmem %s1, 13
    %623 = vst [vmem:[%s622] sm:%s621] %v619
    %s624 = scalar_lea.vmem [#allocation0], 112
    %v625 = vld [vmem:[%s624] sm:%s541]
    %s627 = ssub.s32 2, 1
    %s628 = scalar_lea.vmem %s1, 14
    %629 = vst [vmem:[%s628] sm:%s627] %v625

// kernel: landmark_head_forward.1
$region0: #{landmark_head_forward.1}
  #allocation0 [shape = 'u32[]', space=smem, size = 0x4, offset = 0x4, fixed_abs, tag = 'smem constant byte address 0x4 - core index']
  #allocation1 [shape = 'u32[72,128]{1,0:T(1,128)}', space=vmem, size = 0x9000, scoped, tag = 'internal scratch']
  %s0 = inlined_call_operand.vmem [shape: f32[2,4,256], index: 0, kind: input, shape index: {}]
  %s1 = inlined_call_operand.vmem [shape: f32[256,1920], index: 1, kind: input, shape index: {}]
  %s2 = inlined_call_operand.vmem [shape: f32[1,1920], index: 2, kind: input, shape index: {}]
  %s3 = inlined_call_operand.vmem [shape: f32[2,4,1920], index: 3, kind: output, shape index: {}]
  %s4 = sld [smem:[#allocation0]]
  $region45: #{landmark_head_forward.1} parent=0
    _
  %s6 = ssub.s32 1, %s4
  %s7 = scalar_select 0, %s6, %s4
  loop: start=0, step=1, limit=4
  $region2: #{landmark_head_forward.1} parent=0 // loop_pre_header
    _
  $region3: #{landmark_head_forward.1} parent=0 // loop_header
    %s9 = sphi 0, %s13
    %p10 = scmp.ge.s32.totalorder %s9, 4
    %s16 = sphi 0, %s28
    %s17 = sphi 0, %s24
    %s18 = sphi 0, %s16
    %s19 = sphi 0, %s17
    %s20 = sphi 0, %s18
    %s21 = sphi 0, %s19
    %s33 = sphi 0, %s35
    %s36 = sphi 0, %s33
    %s37 = sphi 0, %s36
    %s53 = sphi 0, %s37
    %s57 = sphi 0, %s57
    %s59 = sphi 0, %s57
    %s60 = sphi 0, %s59
    %s74 = sphi 0, %s60
    %s78 = sphi 0, %s78
    %s80 = sphi 0, %s78
    %s81 = sphi 0, %s80
    %s95 = sphi 0, %s81
    %s103 = sphi 0, %s105
    %s106 = sphi 0, %s103
    %s107 = sphi 0, %s106
    %s123 = sphi 0, %s107
  $region4: #{landmark_head_forward.1} parent=0 // loop_header_branch
    %12 = sbr.rel (%p10) target = $region8
  $region5: #{landmark_head_forward.1} parent=0 // loop_body
    %s14 = ssub.s32 %s9, 1
    %s15 = ssub.s32 %s9, 2
    %s22 = sadd.s32 1, %s17
    %p23 = scmp.ge.s32.totalorder %s22, 1
    %s24 = scalar_select %p23, 0, %s22
    %s25 = sadd.s32 1, %s16
    %s26 = scalar_select %p23, %s25, %s16
    %p27 = scmp.ge.s32.totalorder %s26, 2
    %s28 = scalar_select %p27, 0, %s26
    %s29 = ssub.s32 %s16, %s28
    %s30 = ssub.s32 %s17, %s24
    %s31 = sor.u32 %s29, %s30
    %p32 = scmp.eq.s32.totalorder %s31, 0
    %s34 = sadd.s32 %s33, 1
    %s35 = scalar_select %p32, %s33, %s34
    %p38 = pneg %p32
    %p39 = scmp.eq.s32.totalorder %s9, 1
    %p40 = por %p38, %p39
    %p41 = scmp.ne.s32.totalorder %s33, %s36
    %p42 = scmp.eq.s32.totalorder %s9, 0
    %p43 = por %p41, %p42
    %p44 = scmp.ne.s32.totalorder %s33, %s36
    %p45 = scmp.eq.s32.totalorder %s14, 1
    %p46 = por %p44, %p45
    %p47 = scmp.ne.s32.totalorder %s36, %s37
    %p48 = scmp.eq.s32.totalorder %s14, 0
    %p49 = por %p47, %p48
    %p50 = scmp.ne.s32.totalorder %s36, %s37
    %p51 = scmp.eq.s32.totalorder %s15, 1
    %p52 = por %p50, %p51
    %p54 = scmp.ne.s32.totalorder %s37, %s53
    %p55 = scmp.eq.s32.totalorder %s15, 0
    %p56 = por %p54, %p55
    %s58 = sadd.s32 %s57, 1
    %p61 = scmp.eq.s32.totalorder %s9, 1
    %p62 = scmp.ne.s32.totalorder %s57, %s59
    %p63 = scmp.eq.s32.totalorder %s9, 0
    %p64 = por %p62, %p63
    %p65 = scmp.ne.s32.totalorder %s57, %s59
    %p66 = scmp.eq.s32.totalorder %s14, 1
    %p67 = por %p65, %p66
    %p68 = scmp.ne.s32.totalorder %s59, %s60
    %p69 = scmp.eq.s32.totalorder %s14, 0
    %p70 = por %p68, %p69
    %p71 = scmp.ne.s32.totalorder %s59, %s60
    %p72 = scmp.eq.s32.totalorder %s15, 1
    %p73 = por %p71, %p72
    %p75 = scmp.ne.s32.totalorder %s60, %s74
    %p76 = scmp.eq.s32.totalorder %s15, 0
    %p77 = por %p75, %p76
    %s79 = sadd.s32 %s78, 1
    %p82 = scmp.eq.s32.totalorder %s9, 1
    %p83 = scmp.ne.s32.totalorder %s78, %s80
    %p84 = scmp.eq.s32.totalorder %s9, 0
    %p85 = por %p83, %p84
    %p86 = scmp.ne.s32.totalorder %s78, %s80
    %p87 = scmp.eq.s32.totalorder %s14, 1
    %p88 = por %p86, %p87
    %p89 = scmp.ne.s32.totalorder %s80, %s81
    %p90 = scmp.eq.s32.totalorder %s14, 0
    %p91 = por %p89, %p90
    %p92 = scmp.ne.s32.totalorder %s80, %s81
    %p93 = scmp.eq.s32.totalorder %s15, 1
    %p94 = por %p92, %p93
    %p96 = scmp.ne.s32.totalorder %s81, %s95
    %p97 = scmp.eq.s32.totalorder %s15, 0
    %p98 = por %p96, %p97
    %s99 = ssub.s32 %s16, %s28
    %s100 = ssub.s32 %s17, %s24
    %s101 = sor.u32 %s99, %s100
    %p102 = scmp.eq.s32.totalorder %s101, 0
    %s104 = sadd.s32 %s103, 1
    %s105 = scalar_select %p102, %s103, %s104
    %p108 = pneg %p102
    %p109 = scmp.eq.s32.totalorder %s9, 1
    %p110 = por %p108, %p109
    %p111 = scmp.ne.s32.totalorder %s103, %s106
    %p112 = scmp.eq.s32.totalorder %s9, 0
    %p113 = por %p111, %p112
    %p114 = scmp.ne.s32.totalorder %s103, %s106
    %p115 = scmp.eq.s32.totalorder %s14, 1
    %p116 = por %p114, %p115
    %p117 = scmp.ne.s32.totalorder %s106, %s107
    %p118 = scmp.eq.s32.totalorder %s14, 0
    %p119 = por %p117, %p118
    %p120 = scmp.ne.s32.totalorder %s106, %s107
    %p121 = scmp.eq.s32.totalorder %s15, 1
    %p122 = por %p120, %p121
    %p124 = scmp.ne.s32.totalorder %s107, %s123
    %p125 = scmp.eq.s32.totalorder %s15, 0
    %p126 = por %p124, %p125
    %p127 = scmp.le.s32.totalorder 1, %s9
    %p128 = scmp.lt.s32.totalorder %s9, 3
    %p129 = pnand %p127, %p128
    %p130 = pneg %p129
    // Predicated region
    $region9: #{landmark_head_forward.1} parent=5 // pred_check
      _
    $region10: #{landmark_head_forward.1} parent=5 // pred_check_branch
      %132 = sbr.rel (%p129) target = $region12
    $region11: #{landmark_head_forward.1} parent=5 // pred_region
      %s133 = ssub.s32 %s9, 1
      // Predicated region
      $region13: #{landmark_head_forward.1} parent=11 // pred_check
        %p134 = pneg %p70
      $region14: #{landmark_head_forward.1} parent=11 // pred_check_branch
        %136 = sbr.rel (%p134) target = $region16
      $region15: #{landmark_head_forward.1} parent=11 // pred_region
        _
      $region16: #{landmark_head_forward.1} parent=11 // pred_fallthru
        _
      // Predicated region
      $region17: #{landmark_head_forward.1} parent=11 // pred_check
        %p137 = pneg %p91
      $region18: #{landmark_head_forward.1} parent=11 // pred_check_branch
        %139 = sbr.rel (%p137) target = $region20
      $region19: #{landmark_head_forward.1} parent=11 // pred_region
        _
      $region20: #{landmark_head_forward.1} parent=11 // pred_fallthru
        _
    $region12: #{landmark_head_forward.1} parent=5 // pred_fallthru
      _
    %p140 = scmp.lt.s32.totalorder %s9, 2
    // Predicated region
    $region21: #{landmark_head_forward.1} parent=5 // pred_check
      %p141 = pneg %p140
    $region22: #{landmark_head_forward.1} parent=5 // pred_check_branch
      %143 = sbr.rel (%p141) target = $region24
    $region23: #{landmark_head_forward.1} parent=5 // pred_region
      // Predicated region
      $region25: #{landmark_head_forward.1} parent=23 // pred_check
        %p144 = pneg %p43
      $region26: #{landmark_head_forward.1} parent=23 // pred_check_branch
        %146 = sbr.rel (%p144) target = $region28
      $region27: #{landmark_head_forward.1} parent=23 // pred_region
        %p147 = scmp.lt.s32.totalorder %s16, 1
        %s148 = scalar_select %p147, %s16, 1
        %p149 = scmp.lt.s32.totalorder %s17, 0
        %s150 = scalar_select %p149, %s17, 0
        %s151 = smul.addr %s150, 2
        %s152 = smul.addr %s148, 2
        %s153 = sadd.s32 %s151, %s152
        %s154 = smul.addr %s153, 4
        %s155 = scalar_lea.vmem %s0, %s154
      $region28: #{landmark_head_forward.1} parent=23 // pred_fallthru
        _
    $region24: #{landmark_head_forward.1} parent=5 // pred_fallthru
      _
    %p156 = scmp.le.s32.totalorder 1, %s9
    %p157 = scmp.lt.s32.totalorder %s9, 3
    %p158 = pnand %p156, %p157
    %p159 = pneg %p158
    // Predicated region
    $region29: #{landmark_head_forward.1} parent=5 // pred_check
      _
    $region30: #{landmark_head_forward.1} parent=5 // pred_check_branch
      %161 = sbr.rel (%p158) target = $region32
    $region31: #{landmark_head_forward.1} parent=5 // pred_region
      %s162 = ssub.s32 %s9, 1
      %p163 = scmp.lt.s32.totalorder %s18, 1
      %s164 = scalar_select %p163, %s18, 1
      %p165 = scmp.lt.s32.totalorder %s19, 0
      %s166 = scalar_select %p165, %s19, 0
      %s167 = smul.addr %s166, 2
      %s168 = smul.addr %s164, 2
      %s169 = sadd.s32 %s167, %s168
      %s170 = smul.addr %s169, 4
      %s171 = scalar_lea.vmem %s0, %s170
      %p172 = pneg %p49
      %p173 = pneg %p46
      %p174 = pneg %p70
      %p175 = pneg %p67
      %p176 = pneg %p91
      %p177 = pneg %p88
      %p178 = pneg %p119
      %p179 = pneg %p116
      %p180 = scmp.lt.s32.totalorder %s18, 1
      %s181 = scalar_select %p180, %s18, 1
      %p182 = scmp.lt.s32.totalorder %s19, 0
      %s183 = scalar_select %p182, %s19, 0
      %s184 = smul.addr %s183, 15
      %s185 = smul.addr %s181, 15
      %s186 = sadd.s32 %s184, %s185
      %s187 = smul.addr %s186, 4
      %s188 = scalar_lea.vmem %s3, %s187
      %p189 = scmp.lt.s32.totalorder %s18, 1
      %s190 = scalar_select %p189, %s18, 1
      %p191 = scmp.lt.s32.totalorder %s19, 0
      %s192 = scalar_select %p191, %s19, 0
      %s193 = smul.addr %s192, 2
      %s194 = smul.addr %s190, 2
      %s195 = sadd.s32 %s193, %s194
      %s196 = smul.addr %s195, 4
      %s197 = scalar_lea.vmem %s0, %s196
      %p198 = scmp.lt.s32.totalorder %s18, 1
      %s199 = scalar_select %p198, %s18, 1
      %p200 = scmp.lt.s32.totalorder %s19, 0
      %s201 = scalar_select %p200, %s19, 0
      %s202 = smul.addr %s201, 15
      %s203 = smul.addr %s199, 15
      %s204 = sadd.s32 %s202, %s203
      %s205 = smul.addr %s204, 4
      %s206 = scalar_lea.vmem %s3, %s205
      %v207 = vld [vmem:[%s197] sm:$0xff]
      %v208 = vld [vmem:[%s1] sm:$0xff]
      %v209 = vld [vmem:[%s1 + $0x8] sm:$0xff]
      %v210 = vld [vmem:[%s1 + $0x10] sm:$0xff]
      %v211 = vld [vmem:[%s1 + $0x18] sm:$0xff]
      %v212 = vld [vmem:[%s1 + $0x20] sm:$0xff]
      %v213 = vld [vmem:[%s1 + $0x28] sm:$0xff]
      %v214 = vld [vmem:[%s1 + $0x30] sm:$0xff]
      %v215 = vld [vmem:[%s1 + $0x38] sm:$0xff]
      %v216 = vld [vmem:[%s1 + $0x40] sm:$0xff]
      %v217 = vld [vmem:[%s1 + $0x48] sm:$0xff]
      %v218 = vld [vmem:[%s1 + $0x50] sm:$0xff]
      %v219 = vld [vmem:[%s1 + $0x58] sm:$0xff]
      %v220 = vld [vmem:[%s1 + $0x60] sm:$0xff]
      %v221 = vld [vmem:[%s1 + $0x68] sm:$0xff]
      %v222 = vld [vmem:[%s1 + $0x70] sm:$0xff]
      %v223 = vld [vmem:[%s1 + $0x78] sm:$0xff]
      %v224 = vld [vmem:[%s1 + $0x80] sm:$0xff]
      %v225 = vld [vmem:[%s1 + $0x88] sm:$0xff]
      %v226 = vld [vmem:[%s1 + $0x90] sm:$0xff]
      %v227 = vld [vmem:[%s1 + $0x98] sm:$0xff]
      %v228 = vld [vmem:[%s1 + $0xa0] sm:$0xff]
      %v229 = vld [vmem:[%s1 + $0xa8] sm:$0xff]
      %v230 = vld [vmem:[%s1 + $0xb0] sm:$0xff]
      %v231 = vld [vmem:[%s1 + $0xb8] sm:$0xff]
      %v232 = vld [vmem:[%s1 + $0xc0] sm:$0xff]
      %v233 = vld [vmem:[%s1 + $0xc8] sm:$0xff]
      %v234 = vld [vmem:[%s1 + $0xd0] sm:$0xff]
      %v235 = vld [vmem:[%s1 + $0xd8] sm:$0xff]
      %v236 = vld [vmem:[%s1 + $0xe0] sm:$0xff]
      %v237 = vld [vmem:[%s1 + $0xe8] sm:$0xff]
      %v238 = vld [vmem:[%s1 + $0xf0] sm:$0xff]
      %v239 = vld [vmem:[%s1 + $0xf8] sm:$0xff]
      %v240 = vld [vmem:[%s1 + $0x100] sm:$0xff]
      %v241 = vld [vmem:[%s1 + $0x108] sm:$0xff]
      %v242 = vld [vmem:[%s1 + $0x110] sm:$0xff]
      %v243 = vld [vmem:[%s1 + $0x118] sm:$0xff]
      %v244 = vld [vmem:[%s1 + $0x120] sm:$0xff]
      %v245 = vld [vmem:[%s1 + $0x128] sm:$0xff]
      %v246 = vld [vmem:[%s1 + $0x130] sm:$0xff]
      %v247 = vld [vmem:[%s1 + $0x138] sm:$0xff]
      %v248 = vld [vmem:[%s1 + $0x140] sm:$0xff]
      %v249 = vld [vmem:[%s1 + $0x148] sm:$0xff]
      %v250 = vld [vmem:[%s1 + $0x150] sm:$0xff]
      %v251 = vld [vmem:[%s1 + $0x158] sm:$0xff]
      %v252 = vld [vmem:[%s1 + $0x160] sm:$0xff]
      %v253 = vld [vmem:[%s1 + $0x168] sm:$0xff]
      %v254 = vld [vmem:[%s1 + $0x170] sm:$0xff]
      %v255 = vld [vmem:[%s1 + $0x178] sm:$0xff]
      %v256 = vld [vmem:[%s1 + $0x180] sm:$0xff]
      %v257 = vld [vmem:[%s1 + $0x188] sm:$0xff]
      %v258 = vld [vmem:[%s1 + $0x190] sm:$0xff]
      %v259 = vld [vmem:[%s1 + $0x198] sm:$0xff]
      %v260 = vld [vmem:[%s1 + $0x1a0] sm:$0xff]
      %v261 = vld [vmem:[%s1 + $0x1a8] sm:$0xff]
      %v262 = vld [vmem:[%s1 + $0x1b0] sm:$0xff]
      %v263 = vld [vmem:[%s1 + $0x1b8] sm:$0xff]
      %v264 = vld [vmem:[%s1 + $0x1c0] sm:$0xff]
      %v265 = vld [vmem:[%s1 + $0x1c8] sm:$0xff]
      %v266 = vld [vmem:[%s1 + $0x1d0] sm:$0xff]
      %v267 = vld [vmem:[%s1 + $0x1d8] sm:$0xff]
      %v268 = vld [vmem:[%s1 + $0x1e0] sm:$0xff]
      %v269 = vld [vmem:[%s1 + $0x1e8] sm:$0xff]
      %v270 = vld [vmem:[%s1 + $0x1f0] sm:$0xff]
      %v271 = vld [vmem:[%s1 + $0x1f8] sm:$0xff]
      %v272 = vld [vmem:[%s1 + $0x200] sm:$0xff]
      %v273 = vld [vmem:[%s1 + $0x208] sm:$0xff]
      %v274 = vld [vmem:[%s1 + $0x210] sm:$0xff]
      %v275 = vld [vmem:[%s1 + $0x218] sm:$0xff]
      %v276 = vld [vmem:[%s1 + $0x220] sm:$0xff]
      %v277 = vld [vmem:[%s1 + $0x228] sm:$0xff]
      %v278 = vld [vmem:[%s1 + $0x230] sm:$0xff]
      %v279 = vld [vmem:[%s1 + $0x238] sm:$0xff]
      %v280 = vld [vmem:[%s1 + $0x240] sm:$0xff]
      %v281 = vld [vmem:[%s1 + $0x248] sm:$0xff]
      %v282 = vld [vmem:[%s1 + $0x250] sm:$0xff]
      %v283 = vld [vmem:[%s1 + $0x258] sm:$0xff]
      %v284 = vld [vmem:[%s1 + $0x260] sm:$0xff]
      %v285 = vld [vmem:[%s1 + $0x268] sm:$0xff]
      %v286 = vld [vmem:[%s1 + $0x270] sm:$0xff]
      %v287 = vld [vmem:[%s1 + $0x278] sm:$0xff]
      %v288 = vld [vmem:[%s1 + $0x280] sm:$0xff]
      %v289 = vld [vmem:[%s1 + $0x288] sm:$0xff]
      %v290 = vld [vmem:[%s1 + $0x290] sm:$0xff]
      %v291 = vld [vmem:[%s1 + $0x298] sm:$0xff]
      %v292 = vld [vmem:[%s1 + $0x2a0] sm:$0xff]
      %v293 = vld [vmem:[%s1 + $0x2a8] sm:$0xff]
      %v294 = vld [vmem:[%s1 + $0x2b0] sm:$0xff]
      %v295 = vld [vmem:[%s1 + $0x2b8] sm:$0xff]
      %v296 = vld [vmem:[%s1 + $0x2c0] sm:$0xff]
      %v297 = vld [vmem:[%s1 + $0x2c8] sm:$0xff]
      %v298 = vld [vmem:[%s1 + $0x2d0] sm:$0xff]
      %v299 = vld [vmem:[%s1 + $0x2d8] sm:$0xff]
      %v300 = vld [vmem:[%s1 + $0x2e0] sm:$0xff]
      %v301 = vld [vmem:[%s1 + $0x2e8] sm:$0xff]
      %v302 = vld [vmem:[%s1 + $0x2f0] sm:$0xff]
      %v303 = vld [vmem:[%s1 + $0x2f8] sm:$0xff]
      %v304 = vld [vmem:[%s1 + $0x300] sm:$0xff]
      %v305 = vld [vmem:[%s1 + $0x308] sm:$0xff]
      %v306 = vld [vmem:[%s1 + $0x310] sm:$0xff]
      %v307 = vld [vmem:[%s1 + $0x318] sm:$0xff]
      %v308 = vld [vmem:[%s1 + $0x320] sm:$0xff]
      %v309 = vld [vmem:[%s1 + $0x328] sm:$0xff]
      %v310 = vld [vmem:[%s1 + $0x330] sm:$0xff]
      %v311 = vld [vmem:[%s1 + $0x338] sm:$0xff]
      %v312 = vld [vmem:[%s1 + $0x340] sm:$0xff]
      %v313 = vld [vmem:[%s1 + $0x348] sm:$0xff]
      %v314 = vld [vmem:[%s1 + $0x350] sm:$0xff]
      %v315 = vld [vmem:[%s1 + $0x358] sm:$0xff]
      %v316 = vld [vmem:[%s1 + $0x360] sm:$0xff]
      %v317 = vld [vmem:[%s1 + $0x368] sm:$0xff]
      %v318 = vld [vmem:[%s1 + $0x370] sm:$0xff]
      %v319 = vld [vmem:[%s1 + $0x378] sm:$0xff]
      %v320 = vld [vmem:[%s1 + $0x380] sm:$0xff]
      %v321 = vld [vmem:[%s1 + $0x388] sm:$0xff]
      %v322 = vld [vmem:[%s1 + $0x390] sm:$0xff]
      %v323 = vld [vmem:[%s1 + $0x398] sm:$0xff]
      %v324 = vld [vmem:[%s1 + $0x3a0] sm:$0xff]
      %v325 = vld [vmem:[%s1 + $0x3a8] sm:$0xff]
      %v326 = vld [vmem:[%s1 + $0x3b0] sm:$0xff]
      %v327 = vld [vmem:[%s1 + $0x3b8] sm:$0xff]
      %v328 = vld [vmem:[%s1 + $0x3c0] sm:$0xff]
      %v329 = vld [vmem:[%s1 + $0x3c8] sm:$0xff]
      %v330 = vld [vmem:[%s1 + $0x3d0] sm:$0xff]
      %v331 = vld [vmem:[%s1 + $0x3d8] sm:$0xff]
      %v332 = vld [vmem:[%s1 + $0x3e0] sm:$0xff]
      %v333 = vld [vmem:[%s1 + $0x3e8] sm:$0xff]
      %v334 = vld [vmem:[%s1 + $0x3f0] sm:$0xff]
      %v335 = vld [vmem:[%s1 + $0x3f8] sm:$0xff]
      %v336 = vld [vmem:[%s1 + $0x400] sm:$0xff]
      %v337 = vld [vmem:[%s1 + $0x408] sm:$0xff]
      %v338 = vld [vmem:[%s1 + $0x410] sm:$0xff]
      %v339 = vld [vmem:[%s1 + $0x418] sm:$0xff]
      %v340 = vld [vmem:[%s1 + $0x420] sm:$0xff]
      %v341 = vld [vmem:[%s1 + $0x428] sm:$0xff]
      %v342 = vld [vmem:[%s1 + $0x430] sm:$0xff]
      %v343 = vld [vmem:[%s1 + $0x438] sm:$0xff]
      %v344 = vld [vmem:[%s1 + $0x440] sm:$0xff]
      %v345 = vld [vmem:[%s1 + $0x448] sm:$0xff]
      %v346 = vld [vmem:[%s1 + $0x450] sm:$0xff]
      %v347 = vld [vmem:[%s1 + $0x458] sm:$0xff]
      %v348 = vld [vmem:[%s1 + $0x460] sm:$0xff]
      %v349 = vld [vmem:[%s1 + $0x468] sm:$0xff]
      %v350 = vld [vmem:[%s1 + $0x470] sm:$0xff]
      %v351 = vld [vmem:[%s1 + $0x478] sm:$0xff]
      %v352 = vld [vmem:[%s1 + $0x480] sm:$0xff]
      %v353 = vld [vmem:[%s1 + $0x488] sm:$0xff]
      %v354 = vld [vmem:[%s1 + $0x490] sm:$0xff]
      %v355 = vld [vmem:[%s1 + $0x498] sm:$0xff]
      %v356 = vld [vmem:[%s1 + $0x4a0] sm:$0xff]
      %v357 = vld [vmem:[%s1 + $0x4a8] sm:$0xff]
      %v358 = vld [vmem:[%s1 + $0x4b0] sm:$0xff]
      %v359 = vld [vmem:[%s1 + $0x4b8] sm:$0xff]
      %v360 = vld [vmem:[%s1 + $0x4c0] sm:$0xff]
      %v361 = vld [vmem:[%s1 + $0x4c8] sm:$0xff]
      %v362 = vld [vmem:[%s1 + $0x4d0] sm:$0xff]
      %v363 = vld [vmem:[%s1 + $0x4d8] sm:$0xff]
      %v364 = vld [vmem:[%s1 + $0x4e0] sm:$0xff]
      %v365 = vld [vmem:[%s1 + $0x4e8] sm:$0xff]
      %v366 = vld [vmem:[%s1 + $0x4f0] sm:$0xff]
      %v367 = vld [vmem:[%s1 + $0x4f8] sm:$0xff]
      %v368 = vld [vmem:[%s1 + $0x500] sm:$0xff]
      %v369 = vld [vmem:[%s1 + $0x508] sm:$0xff]
      %v370 = vld [vmem:[%s1 + $0x510] sm:$0xff]
      %v371 = vld [vmem:[%s1 + $0x518] sm:$0xff]
      %v372 = vld [vmem:[%s1 + $0x520] sm:$0xff]
      %v373 = vld [vmem:[%s1 + $0x528] sm:$0xff]
      %v374 = vld [vmem:[%s1 + $0x530] sm:$0xff]
      %v375 = vld [vmem:[%s1 + $0x538] sm:$0xff]
      %v376 = vld [vmem:[%s1 + $0x540] sm:$0xff]
      %v377 = vld [vmem:[%s1 + $0x548] sm:$0xff]
      %v378 = vld [vmem:[%s1 + $0x550] sm:$0xff]
      %v379 = vld [vmem:[%s1 + $0x558] sm:$0xff]
      %v380 = vld [vmem:[%s1 + $0x560] sm:$0xff]
      %v381 = vld [vmem:[%s1 + $0x568] sm:$0xff]
      %v382 = vld [vmem:[%s1 + $0x570] sm:$0xff]
      %v383 = vld [vmem:[%s1 + $0x578] sm:$0xff]
      %v384 = vld [vmem:[%s1 + $0x580] sm:$0xff]
      %v385 = vld [vmem:[%s1 + $0x588] sm:$0xff]
      %v386 = vld [vmem:[%s1 + $0x590] sm:$0xff]
      %v387 = vld [vmem:[%s1 + $0x598] sm:$0xff]
      %v388 = vld [vmem:[%s1 + $0x5a0] sm:$0xff]
      %v389 = vld [vmem:[%s1 + $0x5a8] sm:$0xff]
      %v390 = vld [vmem:[%s1 + $0x5b0] sm:$0xff]
      %v391 = vld [vmem:[%s1 + $0x5b8] sm:$0xff]
      %v392 = vld [vmem:[%s1 + $0x5c0] sm:$0xff]
      %v393 = vld [vmem:[%s1 + $0x5c8] sm:$0xff]
      %v394 = vld [vmem:[%s1 + $0x5d0] sm:$0xff]
      %v395 = vld [vmem:[%s1 + $0x5d8] sm:$0xff]
      %v396 = vld [vmem:[%s1 + $0x5e0] sm:$0xff]
      %v397 = vld [vmem:[%s1 + $0x5e8] sm:$0xff]
      %v398 = vld [vmem:[%s1 + $0x5f0] sm:$0xff]
      %v399 = vld [vmem:[%s1 + $0x5f8] sm:$0xff]
      %v400 = vld [vmem:[%s1 + $0x600] sm:$0xff]
      %v401 = vld [vmem:[%s1 + $0x608] sm:$0xff]
      %v402 = vld [vmem:[%s1 + $0x610] sm:$0xff]
      %v403 = vld [vmem:[%s1 + $0x618] sm:$0xff]
      %v404 = vld [vmem:[%s1 + $0x620] sm:$0xff]
      %v405 = vld [vmem:[%s1 + $0x628] sm:$0xff]
      %v406 = vld [vmem:[%s1 + $0x630] sm:$0xff]
      %v407 = vld [vmem:[%s1 + $0x638] sm:$0xff]
      %v408 = vld [vmem:[%s1 + $0x640] sm:$0xff]
      %v409 = vld [vmem:[%s1 + $0x648] sm:$0xff]
      %v410 = vld [vmem:[%s1 + $0x650] sm:$0xff]
      %v411 = vld [vmem:[%s1 + $0x658] sm:$0xff]
      %v412 = vld [vmem:[%s1 + $0x660] sm:$0xff]
      %v413 = vld [vmem:[%s1 + $0x668] sm:$0xff]
      %v414 = vld [vmem:[%s1 + $0x670] sm:$0xff]
      %v415 = vld [vmem:[%s1 + $0x678] sm:$0xff]
      %v416 = vld [vmem:[%s1 + $0x680] sm:$0xff]
      %v417 = vld [vmem:[%s1 + $0x688] sm:$0xff]
      %v418 = vld [vmem:[%s1 + $0x690] sm:$0xff]
      %v419 = vld [vmem:[%s1 + $0x698] sm:$0xff]
      %v420 = vld [vmem:[%s1 + $0x6a0] sm:$0xff]
      %v421 = vld [vmem:[%s1 + $0x6a8] sm:$0xff]
      %v422 = vld [vmem:[%s1 + $0x6b0] sm:$0xff]
      %v423 = vld [vmem:[%s1 + $0x6b8] sm:$0xff]
      %v424 = vld [vmem:[%s1 + $0x6c0] sm:$0xff]
      %v425 = vld [vmem:[%s1 + $0x6c8] sm:$0xff]
      %v426 = vld [vmem:[%s1 + $0x6d0] sm:$0xff]
      %v427 = vld [vmem:[%s1 + $0x6d8] sm:$0xff]
      %v428 = vld [vmem:[%s1 + $0x6e0] sm:$0xff]
      %v429 = vld [vmem:[%s1 + $0x6e8] sm:$0xff]
      %v430 = vld [vmem:[%s1 + $0x6f0] sm:$0xff]
      %v431 = vld [vmem:[%s1 + $0x6f8] sm:$0xff]
      %v432 = vld [vmem:[%s1 + $0x700] sm:$0xff]
      %v433 = vld [vmem:[%s1 + $0x708] sm:$0xff]
      %v434 = vld [vmem:[%s1 + $0x710] sm:$0xff]
      %v435 = vld [vmem:[%s1 + $0x718] sm:$0xff]
      %v436 = vld [vmem:[%s1 + $0x720] sm:$0xff]
      %v437 = vld [vmem:[%s1 + $0x728] sm:$0xff]
      %v438 = vld [vmem:[%s1 + $0x730] sm:$0xff]
      %v439 = vld [vmem:[%s1 + $0x738] sm:$0xff]
      %v440 = vld [vmem:[%s1 + $0x740] sm:$0xff]
      %v441 = vld [vmem:[%s1 + $0x748] sm:$0xff]
      %v442 = vld [vmem:[%s1 + $0x750] sm:$0xff]
      %v443 = vld [vmem:[%s1 + $0x758] sm:$0xff]
      %v444 = vld [vmem:[%s1 + $0x760] sm:$0xff]
      %v445 = vld [vmem:[%s1 + $0x768] sm:$0xff]
      %v446 = vld [vmem:[%s1 + $0x770] sm:$0xff]
      %v447 = vld [vmem:[%s1 + $0x778] sm:$0xff]
      %v448 = vld [vmem:[%s1 + $0x780] sm:$0xff]
      %v449 = vld [vmem:[%s1 + $0x788] sm:$0xff]
      %v450 = vld [vmem:[%s1 + $0x790] sm:$0xff]
      %v451 = vld [vmem:[%s1 + $0x798] sm:$0xff]
      %v452 = vld [vmem:[%s1 + $0x7a0] sm:$0xff]
      %v453 = vld [vmem:[%s1 + $0x7a8] sm:$0xff]
      %v454 = vld [vmem:[%s1 + $0x7b0] sm:$0xff]
      %v455 = vld [vmem:[%s1 + $0x7b8] sm:$0xff]
      %v456 = vld [vmem:[%s1 + $0x7c0] sm:$0xff]
      %v457 = vld [vmem:[%s1 + $0x7c8] sm:$0xff]
      %v458 = vld [vmem:[%s1 + $0x7d0] sm:$0xff]
      %v459 = vld [vmem:[%s1 + $0x7d8] sm:$0xff]
      %v460 = vld [vmem:[%s1 + $0x7e0] sm:$0xff]
      %v461 = vld [vmem:[%s1 + $0x7e8] sm:$0xff]
      %v462 = vld [vmem:[%s1 + $0x7f0] sm:$0xff]
      %v463 = vld [vmem:[%s1 + $0x7f8] sm:$0xff]
      %v464 = vld [vmem:[%s1 + $0x800] sm:$0xff]
      %v465 = vld [vmem:[%s1 + $0x808] sm:$0xff]
      %v466 = vld [vmem:[%s1 + $0x810] sm:$0xff]
      %v467 = vld [vmem:[%s1 + $0x818] sm:$0xff]
      %v468 = vld [vmem:[%s1 + $0x820] sm:$0xff]
      %v469 = vld [vmem:[%s1 + $0x828] sm:$0xff]
      %v470 = vld [vmem:[%s1 + $0x830] sm:$0xff]
      %v471 = vld [vmem:[%s1 + $0x838] sm:$0xff]
      %v472 = vld [vmem:[%s1 + $0x840] sm:$0xff]
      %v473 = vld [vmem:[%s1 + $0x848] sm:$0xff]
      %v474 = vld [vmem:[%s1 + $0x850] sm:$0xff]
      %v475 = vld [vmem:[%s1 + $0x858] sm:$0xff]
      %v476 = vld [vmem:[%s1 + $0x860] sm:$0xff]
      %v477 = vld [vmem:[%s1 + $0x868] sm:$0xff]
      %v478 = vld [vmem:[%s1 + $0x870] sm:$0xff]
      %v479 = vld [vmem:[%s1 + $0x878] sm:$0xff]
      %v480 = vld [vmem:[%s1 + $0x880] sm:$0xff]
      %v481 = vld [vmem:[%s1 + $0x888] sm:$0xff]
      %v482 = vld [vmem:[%s1 + $0x890] sm:$0xff]
      %v483 = vld [vmem:[%s1 + $0x898] sm:$0xff]
      %v484 = vld [vmem:[%s1 + $0x8a0] sm:$0xff]
      %v485 = vld [vmem:[%s1 + $0x8a8] sm:$0xff]
      %v486 = vld [vmem:[%s1 + $0x8b0] sm:$0xff]
      %v487 = vld [vmem:[%s1 + $0x8b8] sm:$0xff]
      %v488 = vld [vmem:[%s1 + $0x8c0] sm:$0xff]
      %v489 = vld [vmem:[%s1 + $0x8c8] sm:$0xff]
      %v490 = vld [vmem:[%s1 + $0x8d0] sm:$0xff]
      %v491 = vld [vmem:[%s1 + $0x8d8] sm:$0xff]
      %v492 = vld [vmem:[%s1 + $0x8e0] sm:$0xff]
      %v493 = vld [vmem:[%s1 + $0x8e8] sm:$0xff]
      %v494 = vld [vmem:[%s1 + $0x8f0] sm:$0xff]
      %v495 = vld [vmem:[%s1 + $0x8f8] sm:$0xff]
      %v496 = vld [vmem:[%s1 + $0x900] sm:$0xff]
      %v497 = vld [vmem:[%s1 + $0x908] sm:$0xff]
      %v498 = vld [vmem:[%s1 + $0x910] sm:$0xff]
      %v499 = vld [vmem:[%s1 + $0x918] sm:$0xff]
      %v500 = vld [vmem:[%s1 + $0x920] sm:$0xff]
      %v501 = vld [vmem:[%s1 + $0x928] sm:$0xff]
      %v502 = vld [vmem:[%s1 + $0x930] sm:$0xff]
      %v503 = vld [vmem:[%s1 + $0x938] sm:$0xff]
      %v504 = vld [vmem:[%s1 + $0x940] sm:$0xff]
      %v505 = vld [vmem:[%s1 + $0x948] sm:$0xff]
      %v506 = vld [vmem:[%s1 + $0x950] sm:$0xff]
      %v507 = vld [vmem:[%s1 + $0x958] sm:$0xff]
      %v508 = vld [vmem:[%s1 + $0x960] sm:$0xff]
      %v509 = vld [vmem:[%s1 + $0x968] sm:$0xff]
      %v510 = vld [vmem:[%s1 + $0x970] sm:$0xff]
      %v511 = vld [vmem:[%s1 + $0x978] sm:$0xff]
      %v512 = vld [vmem:[%s1 + $0x980] sm:$0xff]
      %v513 = vld [vmem:[%s1 + $0x988] sm:$0xff]
      %v514 = vld [vmem:[%s1 + $0x990] sm:$0xff]
      %v515 = vld [vmem:[%s1 + $0x998] sm:$0xff]
      %v516 = vld [vmem:[%s1 + $0x9a0] sm:$0xff]
      %v517 = vld [vmem:[%s1 + $0x9a8] sm:$0xff]
      %v518 = vld [vmem:[%s1 + $0x9b0] sm:$0xff]
      %v519 = vld [vmem:[%s1 + $0x9b8] sm:$0xff]
      %v520 = vld [vmem:[%s1 + $0x9c0] sm:$0xff]
      %v521 = vld [vmem:[%s1 + $0x9c8] sm:$0xff]
      %v522 = vld [vmem:[%s1 + $0x9d0] sm:$0xff]
      %v523 = vld [vmem:[%s1 + $0x9d8] sm:$0xff]
      %v524 = vld [vmem:[%s1 + $0x9e0] sm:$0xff]
      %v525 = vld [vmem:[%s1 + $0x9e8] sm:$0xff]
      %v526 = vld [vmem:[%s1 + $0x9f0] sm:$0xff]
      %v527 = vld [vmem:[%s1 + $0x9f8] sm:$0xff]
      %v528 = vld [vmem:[%s1 + $0xa00] sm:$0xff]
      %v529 = vld [vmem:[%s1 + $0xa08] sm:$0xff]
      %v530 = vld [vmem:[%s1 + $0xa10] sm:$0xff]
      %v531 = vld [vmem:[%s1 + $0xa18] sm:$0xff]
      %v532 = vld [vmem:[%s1 + $0xa20] sm:$0xff]
      %v533 = vld [vmem:[%s1 + $0xa28] sm:$0xff]
      %v534 = vld [vmem:[%s1 + $0xa30] sm:$0xff]
      %v535 = vld [vmem:[%s1 + $0xa38] sm:$0xff]
      %v536 = vld [vmem:[%s1 + $0xa40] sm:$0xff]
      %v537 = vld [vmem:[%s1 + $0xa48] sm:$0xff]
      %v538 = vld [vmem:[%s1 + $0xa50] sm:$0xff]
      %v539 = vld [vmem:[%s1 + $0xa58] sm:$0xff]
      %v540 = vld [vmem:[%s1 + $0xa60] sm:$0xff]
      %v541 = vld [vmem:[%s1 + $0xa68] sm:$0xff]
      %v542 = vld [vmem:[%s1 + $0xa70] sm:$0xff]
      %v543 = vld [vmem:[%s1 + $0xa78] sm:$0xff]
      %v544 = vld [vmem:[%s1 + $0xa80] sm:$0xff]
      %v545 = vld [vmem:[%s1 + $0xa88] sm:$0xff]
      %v546 = vld [vmem:[%s1 + $0xa90] sm:$0xff]
      %v547 = vld [vmem:[%s1 + $0xa98] sm:$0xff]
      %v548 = vld [vmem:[%s1 + $0xaa0] sm:$0xff]
      %v549 = vld [vmem:[%s1 + $0xaa8] sm:$0xff]
      %v550 = vld [vmem:[%s1 + $0xab0] sm:$0xff]
      %v551 = vld [vmem:[%s1 + $0xab8] sm:$0xff]
      %v552 = vld [vmem:[%s1 + $0xac0] sm:$0xff]
      %v553 = vld [vmem:[%s1 + $0xac8] sm:$0xff]
      %v554 = vld [vmem:[%s1 + $0xad0] sm:$0xff]
      %v555 = vld [vmem:[%s1 + $0xad8] sm:$0xff]
      %v556 = vld [vmem:[%s1 + $0xae0] sm:$0xff]
      %v557 = vld [vmem:[%s1 + $0xae8] sm:$0xff]
      %v558 = vld [vmem:[%s1 + $0xaf0] sm:$0xff]
      %v559 = vld [vmem:[%s1 + $0xaf8] sm:$0xff]
      %v560 = vld [vmem:[%s1 + $0xb00] sm:$0xff]
      %v561 = vld [vmem:[%s1 + $0xb08] sm:$0xff]
      %v562 = vld [vmem:[%s1 + $0xb10] sm:$0xff]
      %v563 = vld [vmem:[%s1 + $0xb18] sm:$0xff]
      %v564 = vld [vmem:[%s1 + $0xb20] sm:$0xff]
      %v565 = vld [vmem:[%s1 + $0xb28] sm:$0xff]
      %v566 = vld [vmem:[%s1 + $0xb30] sm:$0xff]
      %v567 = vld [vmem:[%s1 + $0xb38] sm:$0xff]
      %v568 = vld [vmem:[%s1 + $0xb40] sm:$0xff]
      %v569 = vld [vmem:[%s1 + $0xb48] sm:$0xff]
      %v570 = vld [vmem:[%s1 + $0xb50] sm:$0xff]
      %v571 = vld [vmem:[%s1 + $0xb58] sm:$0xff]
      %v572 = vld [vmem:[%s1 + $0xb60] sm:$0xff]
      %v573 = vld [vmem:[%s1 + $0xb68] sm:$0xff]
      %v574 = vld [vmem:[%s1 + $0xb70] sm:$0xff]
      %v575 = vld [vmem:[%s1 + $0xb78] sm:$0xff]
      %v576 = vld [vmem:[%s1 + $0xb80] sm:$0xff]
      %v577 = vld [vmem:[%s1 + $0xb88] sm:$0xff]
      %v578 = vld [vmem:[%s1 + $0xb90] sm:$0xff]
      %v579 = vld [vmem:[%s1 + $0xb98] sm:$0xff]
      %v580 = vld [vmem:[%s1 + $0xba0] sm:$0xff]
      %v581 = vld [vmem:[%s1 + $0xba8] sm:$0xff]
      %v582 = vld [vmem:[%s1 + $0xbb0] sm:$0xff]
      %v583 = vld [vmem:[%s1 + $0xbb8] sm:$0xff]
      %v584 = vld [vmem:[%s1 + $0xbc0] sm:$0xff]
      %v585 = vld [vmem:[%s1 + $0xbc8] sm:$0xff]
      %v586 = vld [vmem:[%s1 + $0xbd0] sm:$0xff]
      %v587 = vld [vmem:[%s1 + $0xbd8] sm:$0xff]
      %v588 = vld [vmem:[%s1 + $0xbe0] sm:$0xff]
      %v589 = vld [vmem:[%s1 + $0xbe8] sm:$0xff]
      %v590 = vld [vmem:[%s1 + $0xbf0] sm:$0xff]
      %v591 = vld [vmem:[%s1 + $0xbf8] sm:$0xff]
      %v592 = vld [vmem:[%s1 + $0xc00] sm:$0xff]
      %v593 = vld [vmem:[%s1 + $0xc08] sm:$0xff]
      %v594 = vld [vmem:[%s1 + $0xc10] sm:$0xff]
      %v595 = vld [vmem:[%s1 + $0xc18] sm:$0xff]
      %v596 = vld [vmem:[%s1 + $0xc20] sm:$0xff]
      %v597 = vld [vmem:[%s1 + $0xc28] sm:$0xff]
      %v598 = vld [vmem:[%s1 + $0xc30] sm:$0xff]
      %v599 = vld [vmem:[%s1 + $0xc38] sm:$0xff]
      %v600 = vld [vmem:[%s1 + $0xc40] sm:$0xff]
      %v601 = vld [vmem:[%s1 + $0xc48] sm:$0xff]
      %v602 = vld [vmem:[%s1 + $0xc50] sm:$0xff]
      %v603 = vld [vmem:[%s1 + $0xc58] sm:$0xff]
      %v604 = vld [vmem:[%s1 + $0xc60] sm:$0xff]
      %v605 = vld [vmem:[%s1 + $0xc68] sm:$0xff]
      %v606 = vld [vmem:[%s1 + $0xc70] sm:$0xff]
      %v607 = vld [vmem:[%s1 + $0xc78] sm:$0xff]
      %v608 = vld [vmem:[%s1 + $0xc80] sm:$0xff]
      %v609 = vld [vmem:[%s1 + $0xc88] sm:$0xff]
      %v610 = vld [vmem:[%s1 + $0xc90] sm:$0xff]
      %v611 = vld [vmem:[%s1 + $0xc98] sm:$0xff]
      %v612 = vld [vmem:[%s1 + $0xca0] sm:$0xff]
      %v613 = vld [vmem:[%s1 + $0xca8] sm:$0xff]
      %v614 = vld [vmem:[%s1 + $0xcb0] sm:$0xff]
      %v615 = vld [vmem:[%s1 + $0xcb8] sm:$0xff]
      %v616 = vld [vmem:[%s1 + $0xcc0] sm:$0xff]
      %v617 = vld [vmem:[%s1 + $0xcc8] sm:$0xff]
      %v618 = vld [vmem:[%s1 + $0xcd0] sm:$0xff]
      %v619 = vld [vmem:[%s1 + $0xcd8] sm:$0xff]
      %v620 = vld [vmem:[%s1 + $0xce0] sm:$0xff]
      %v621 = vld [vmem:[%s1 + $0xce8] sm:$0xff]
      %v622 = vld [vmem:[%s1 + $0xcf0] sm:$0xff]
      %v623 = vld [vmem:[%s1 + $0xcf8] sm:$0xff]
      %v624 = vld [vmem:[%s1 + $0xd00] sm:$0xff]
      %v625 = vld [vmem:[%s1 + $0xd08] sm:$0xff]
      %v626 = vld [vmem:[%s1 + $0xd10] sm:$0xff]
      %v627 = vld [vmem:[%s1 + $0xd18] sm:$0xff]
      %v628 = vld [vmem:[%s1 + $0xd20] sm:$0xff]
      %v629 = vld [vmem:[%s1 + $0xd28] sm:$0xff]
      %v630 = vld [vmem:[%s1 + $0xd30] sm:$0xff]
      %v631 = vld [vmem:[%s1 + $0xd38] sm:$0xff]
      %v632 = vld [vmem:[%s1 + $0xd40] sm:$0xff]
      %v633 = vld [vmem:[%s1 + $0xd48] sm:$0xff]
      %v634 = vld [vmem:[%s1 + $0xd50] sm:$0xff]
      %v635 = vld [vmem:[%s1 + $0xd58] sm:$0xff]
      %v636 = vld [vmem:[%s1 + $0xd60] sm:$0xff]
      %v637 = vld [vmem:[%s1 + $0xd68] sm:$0xff]
      %v638 = vld [vmem:[%s1 + $0xd70] sm:$0xff]
      %v639 = vld [vmem:[%s1 + $0xd78] sm:$0xff]
      %v640 = vld [vmem:[%s1 + $0xd80] sm:$0xff]
      %v641 = vld [vmem:[%s1 + $0xd88] sm:$0xff]
      %v642 = vld [vmem:[%s1 + $0xd90] sm:$0xff]
      %v643 = vld [vmem:[%s1 + $0xd98] sm:$0xff]
      %v644 = vld [vmem:[%s1 + $0xda0] sm:$0xff]
      %v645 = vld [vmem:[%s1 + $0xda8] sm:$0xff]
      %v646 = vld [vmem:[%s1 + $0xdb0] sm:$0xff]
      %v647 = vld [vmem:[%s1 + $0xdb8] sm:$0xff]
      %v648 = vld [vmem:[%s1 + $0xdc0] sm:$0xff]
      %v649 = vld [vmem:[%s1 + $0xdc8] sm:$0xff]
      %v650 = vld [vmem:[%s1 + $0xdd0] sm:$0xff]
      %v651 = vld [vmem:[%s1 + $0xdd8] sm:$0xff]
      %v652 = vld [vmem:[%s1 + $0xde0] sm:$0xff]
      %v653 = vld [vmem:[%s1 + $0xde8] sm:$0xff]
      %v654 = vld [vmem:[%s1 + $0xdf0] sm:$0xff]
      %v655 = vld [vmem:[%s1 + $0xdf8] sm:$0xff]
      %v656 = vld [vmem:[%s1 + $0xe00] sm:$0xff]
      %v657 = vld [vmem:[%s1 + $0xe08] sm:$0xff]
      %v658 = vld [vmem:[%s1 + $0xe10] sm:$0xff]
      %v659 = vld [vmem:[%s1 + $0xe18] sm:$0xff]
      %v660 = vld [vmem:[%s1 + $0xe20] sm:$0xff]
      %v661 = vld [vmem:[%s1 + $0xe28] sm:$0xff]
      %v662 = vld [vmem:[%s1 + $0xe30] sm:$0xff]
      %v663 = vld [vmem:[%s1 + $0xe38] sm:$0xff]
      %v664 = vld [vmem:[%s1 + $0xe40] sm:$0xff]
      %v665 = vld [vmem:[%s1 + $0xe48] sm:$0xff]
      %v666 = vld [vmem:[%s1 + $0xe50] sm:$0xff]
      %v667 = vld [vmem:[%s1 + $0xe58] sm:$0xff]
      %v668 = vld [vmem:[%s1 + $0xe60] sm:$0xff]
      %v669 = vld [vmem:[%s1 + $0xe68] sm:$0xff]
      %v670 = vld [vmem:[%s1 + $0xe70] sm:$0xff]
      %v671 = vld [vmem:[%s1 + $0xe78] sm:$0xff]
      %v672 = vld [vmem:[%s1 + $0xe80] sm:$0xff]
      %v673 = vld [vmem:[%s1 + $0xe88] sm:$0xff]
      %v674 = vld [vmem:[%s1 + $0xe90] sm:$0xff]
      %v675 = vld [vmem:[%s1 + $0xe98] sm:$0xff]
      %v676 = vld [vmem:[%s1 + $0xea0] sm:$0xff]
      %v677 = vld [vmem:[%s1 + $0xea8] sm:$0xff]
      %v678 = vld [vmem:[%s1 + $0xeb0] sm:$0xff]
      %v679 = vld [vmem:[%s1 + $0xeb8] sm:$0xff]
      %v680 = vld [vmem:[%s1 + $0xec0] sm:$0xff]
      %v681 = vld [vmem:[%s1 + $0xec8] sm:$0xff]
      %v682 = vld [vmem:[%s1 + $0xed0] sm:$0xff]
      %v683 = vld [vmem:[%s1 + $0xed8] sm:$0xff]
      %v684 = vld [vmem:[%s1 + $0xee0] sm:$0xff]
      %v685 = vld [vmem:[%s1 + $0xee8] sm:$0xff]
      %v686 = vld [vmem:[%s1 + $0xef0] sm:$0xff]
      %v687 = vld [vmem:[%s1 + $0xef8] sm:$0xff]
      %v688 = vld [vmem:[%s2] sm:$0xff]
      %v689 = vld [vmem:[%s2 + $0x8] sm:$0xff]
      %v692 = vperm.slane %v688, 0
      %v693 = vperm.slane %v688, 1
      %v694 = vperm.slane %v688, 2
      %v695 = vperm.slane %v688, 3
      %v696 = vperm.slane %v688, 4
      %v697 = vperm.slane %v688, 5
      %v698 = vperm.slane %v688, 6
      %v699 = vperm.slane %v688, 7
      %v700 = vperm.slane %v689, 0
      %v701 = vperm.slane %v689, 1
      %v702 = vperm.slane %v689, 2
      %v703 = vperm.slane %v689, 3
      %v704 = vperm.slane %v689, 4
      %v705 = vperm.slane %v689, 5
      %v706 = vperm.slane %v689, 6
      %723 = vst [vmem:[#allocation1] ss:$2 sm:$0xff] %v207
      %v724 = vld.sshfl [vmem:[#allocation1] sm:$0xff pattern:$0x75316420]
      %v725 = vld.sshfl [vmem:[#allocation1 + $0x8] sm:$0xff pattern:$0x75316420]
      %728 = vmatpush.msra.mxu0 %v433
      %729 = vmatpush.msra.mxu0 %v418
      %730 = vmatpush.msra.mxu0 %v403
      %731 = vmatpush.msra.mxu0 %v388
      %732 = vmatpush.msra.mxu0 %v373
      %733 = vmatpush.msra.mxu0 %v358
      %734 = vmatpush.msra.mxu0 %v343
      %735 = vmatpush.msra.mxu0 %v328
      %736 = vmatpush.msra.mxu0 %v313
      %737 = vmatpush.msra.mxu0 %v298
      %738 = vmatpush.msra.mxu0 %v283
      %739 = vmatpush.msra.mxu0 %v268
      %740 = vmatpush.msra.mxu0 %v253
      %741 = vmatpush.msra.mxu0 %v238
      %742 = vmatpush.msra.mxu0 %v223
      %743 = vmatpush.msra.mxu0 %v208
      %744 = vmatmul.f32.gmra.mxu0 %v724
      %v745 = vpop.f32.mrf.mxu0
      %v746 = vadd.f32 %v692, %v745
      %747 = vdwg.mxu0
      %748 = vmatpush.msra.mxu0 %v673
      %749 = vmatpush.msra.mxu0 %v658
      %750 = vmatpush.msra.mxu0 %v643
      %751 = vmatpush.msra.mxu0 %v628
      %752 = vmatpush.msra.mxu0 %v613
      %753 = vmatpush.msra.mxu0 %v598
      %754 = vmatpush.msra.mxu0 %v583
      %755 = vmatpush.msra.mxu0 %v568
      %756 = vmatpush.msra.mxu0 %v553
      %757 = vmatpush.msra.mxu0 %v538
      %758 = vmatpush.msra.mxu0 %v523
      %759 = vmatpush.msra.mxu0 %v508
      %760 = vmatpush.msra.mxu0 %v493
      %761 = vmatpush.msra.mxu0 %v478
      %762 = vmatpush.msra.mxu0 %v463
      %763 = vmatpush.msra.mxu0 %v448
      %764 = vmatmul.f32.gmra.mxu0 %v725
      %v765 = vpop.f32.mrf.mxu0
      %v766 = vadd.f32 %v746, %v765
      %767 = vdwg.mxu0
      %768 = vmatpush.msra.mxu0 %v434
      %769 = vmatpush.msra.mxu0 %v419
      %770 = vmatpush.msra.mxu0 %v404
      %771 = vmatpush.msra.mxu0 %v389
      %772 = vmatpush.msra.mxu0 %v374
      %773 = vmatpush.msra.mxu0 %v359
      %774 = vmatpush.msra.mxu0 %v344
      %775 = vmatpush.msra.mxu0 %v329
      %776 = vmatpush.msra.mxu0 %v314
      %777 = vmatpush.msra.mxu0 %v299
      %778 = vmatpush.msra.mxu0 %v284
      %779 = vmatpush.msra.mxu0 %v269
      %780 = vmatpush.msra.mxu0 %v254
      %781 = vmatpush.msra.mxu0 %v239
      %782 = vmatpush.msra.mxu0 %v224
      %783 = vmatpush.msra.mxu0 %v209
      %784 = vmatmul.f32.gmra.mxu0 %v724
      %v785 = vpop.f32.mrf.mxu0
      %v786 = vadd.f32 %v693, %v785
      %787 = vdwg.mxu0
      %788 = vmatpush.msra.mxu0 %v674
      %789 = vmatpush.msra.mxu0 %v659
      %790 = vmatpush.msra.mxu0 %v644
      %791 = vmatpush.msra.mxu0 %v629
      %792 = vmatpush.msra.mxu0 %v614
      %793 = vmatpush.msra.mxu0 %v599
      %794 = vmatpush.msra.mxu0 %v584
      %795 = vmatpush.msra.mxu0 %v569
      %796 = vmatpush.msra.mxu0 %v554
      %797 = vmatpush.msra.mxu0 %v539
      %798 = vmatpush.msra.mxu0 %v524
      %799 = vmatpush.msra.mxu0 %v509
      %800 = vmatpush.msra.mxu0 %v494
      %801 = vmatpush.msra.mxu0 %v479
      %802 = vmatpush.msra.mxu0 %v464
      %803 = vmatpush.msra.mxu0 %v449
      %804 = vmatmul.f32.gmra.mxu0 %v725
      %v805 = vpop.f32.mrf.mxu0
      %v806 = vadd.f32 %v786, %v805
      %807 = vdwg.mxu0
      %808 = vmatpush.msra.mxu0 %v435
      %809 = vmatpush.msra.mxu0 %v420
      %810 = vmatpush.msra.mxu0 %v405
      %811 = vmatpush.msra.mxu0 %v390
      %812 = vmatpush.msra.mxu0 %v375
      %813 = vmatpush.msra.mxu0 %v360
      %814 = vmatpush.msra.mxu0 %v345
      %815 = vmatpush.msra.mxu0 %v330
      %816 = vmatpush.msra.mxu0 %v315
      %817 = vmatpush.msra.mxu0 %v300
      %818 = vmatpush.msra.mxu0 %v285
      %819 = vmatpush.msra.mxu0 %v270
      %820 = vmatpush.msra.mxu0 %v255
      %821 = vmatpush.msra.mxu0 %v240
      %822 = vmatpush.msra.mxu0 %v225
      %823 = vmatpush.msra.mxu0 %v210
      %824 = vmatmul.f32.gmra.mxu0 %v724
      %v825 = vpop.f32.mrf.mxu0
      %v826 = vadd.f32 %v694, %v825
      %827 = vdwg.mxu0
      %828 = vmatpush.msra.mxu0 %v675
      %829 = vmatpush.msra.mxu0 %v660
      %830 = vmatpush.msra.mxu0 %v645
      %831 = vmatpush.msra.mxu0 %v630
      %832 = vmatpush.msra.mxu0 %v615
      %833 = vmatpush.msra.mxu0 %v600
      %834 = vmatpush.msra.mxu0 %v585
      %835 = vmatpush.msra.mxu0 %v570
      %836 = vmatpush.msra.mxu0 %v555
      %837 = vmatpush.msra.mxu0 %v540
      %838 = vmatpush.msra.mxu0 %v525
      %839 = vmatpush.msra.mxu0 %v510
      %840 = vmatpush.msra.mxu0 %v495
      %841 = vmatpush.msra.mxu0 %v480
      %842 = vmatpush.msra.mxu0 %v465
      %843 = vmatpush.msra.mxu0 %v450
      %844 = vmatmul.f32.gmra.mxu0 %v725
      %v845 = vpop.f32.mrf.mxu0
      %v846 = vadd.f32 %v826, %v845
      %847 = vdwg.mxu0
      %848 = vmatpush.msra.mxu0 %v436
      %849 = vmatpush.msra.mxu0 %v421
      %850 = vmatpush.msra.mxu0 %v406
      %851 = vmatpush.msra.mxu0 %v391
      %852 = vmatpush.msra.mxu0 %v376
      %853 = vmatpush.msra.mxu0 %v361
      %854 = vmatpush.msra.mxu0 %v346
      %855 = vmatpush.msra.mxu0 %v331
      %856 = vmatpush.msra.mxu0 %v316
      %857 = vmatpush.msra.mxu0 %v301
      %858 = vmatpush.msra.mxu0 %v286
      %859 = vmatpush.msra.mxu0 %v271
      %860 = vmatpush.msra.mxu0 %v256
      %861 = vmatpush.msra.mxu0 %v241
      %862 = vmatpush.msra.mxu0 %v226
      %863 = vmatpush.msra.mxu0 %v211
      %864 = vmatmul.f32.gmra.mxu0 %v724
      %v865 = vpop.f32.mrf.mxu0
      %v866 = vadd.f32 %v695, %v865
      %867 = vdwg.mxu0
      %868 = vmatpush.msra.mxu0 %v676
      %869 = vmatpush.msra.mxu0 %v661
      %870 = vmatpush.msra.mxu0 %v646
      %871 = vmatpush.msra.mxu0 %v631
      %872 = vmatpush.msra.mxu0 %v616
      %873 = vmatpush.msra.mxu0 %v601
      %874 = vmatpush.msra.mxu0 %v586
      %875 = vmatpush.msra.mxu0 %v571
      %876 = vmatpush.msra.mxu0 %v556
      %877 = vmatpush.msra.mxu0 %v541
      %878 = vmatpush.msra.mxu0 %v526
      %879 = vmatpush.msra.mxu0 %v511
      %880 = vmatpush.msra.mxu0 %v496
      %881 = vmatpush.msra.mxu0 %v481
      %882 = vmatpush.msra.mxu0 %v466
      %883 = vmatpush.msra.mxu0 %v451
      %884 = vmatmul.f32.gmra.mxu0 %v725
      %v885 = vpop.f32.mrf.mxu0
      %v886 = vadd.f32 %v866, %v885
      %887 = vdwg.mxu0
      %888 = vmatpush.msra.mxu0 %v437
      %889 = vmatpush.msra.mxu0 %v422
      %890 = vmatpush.msra.mxu0 %v407
      %891 = vmatpush.msra.mxu0 %v392
      %892 = vmatpush.msra.mxu0 %v377
      %893 = vmatpush.msra.mxu0 %v362
      %894 = vmatpush.msra.mxu0 %v347
      %895 = vmatpush.msra.mxu0 %v332
      %896 = vmatpush.msra.mxu0 %v317
      %897 = vmatpush.msra.mxu0 %v302
      %898 = vmatpush.msra.mxu0 %v287
      %899 = vmatpush.msra.mxu0 %v272
      %900 = vmatpush.msra.mxu0 %v257
      %901 = vmatpush.msra.mxu0 %v242
      %902 = vmatpush.msra.mxu0 %v227
      %903 = vmatpush.msra.mxu0 %v212
      %904 = vmatmul.f32.gmra.mxu0 %v724
      %v905 = vpop.f32.mrf.mxu0
      %v906 = vadd.f32 %v696, %v905
      %907 = vdwg.mxu0
      %908 = vmatpush.msra.mxu0 %v677
      %909 = vmatpush.msra.mxu0 %v662
      %910 = vmatpush.msra.mxu0 %v647
      %911 = vmatpush.msra.mxu0 %v632
      %912 = vmatpush.msra.mxu0 %v617
      %913 = vmatpush.msra.mxu0 %v602
      %914 = vmatpush.msra.mxu0 %v587
      %915 = vmatpush.msra.mxu0 %v572
      %916 = vmatpush.msra.mxu0 %v557
      %917 = vmatpush.msra.mxu0 %v542
      %918 = vmatpush.msra.mxu0 %v527
      %919 = vmatpush.msra.mxu0 %v512
      %920 = vmatpush.msra.mxu0 %v497
      %921 = vmatpush.msra.mxu0 %v482
      %922 = vmatpush.msra.mxu0 %v467
      %923 = vmatpush.msra.mxu0 %v452
      %924 = vmatmul.f32.gmra.mxu0 %v725
      %v925 = vpop.f32.mrf.mxu0
      %v926 = vadd.f32 %v906, %v925
      %927 = vdwg.mxu0
      %928 = vmatpush.msra.mxu0 %v438
      %929 = vmatpush.msra.mxu0 %v423
      %930 = vmatpush.msra.mxu0 %v408
      %931 = vmatpush.msra.mxu0 %v393
      %932 = vmatpush.msra.mxu0 %v378
      %933 = vmatpush.msra.mxu0 %v363
      %934 = vmatpush.msra.mxu0 %v348
      %935 = vmatpush.msra.mxu0 %v333
      %936 = vmatpush.msra.mxu0 %v318
      %937 = vmatpush.msra.mxu0 %v303
      %938 = vmatpush.msra.mxu0 %v288
      %939 = vmatpush.msra.mxu0 %v273
      %940 = vmatpush.msra.mxu0 %v258
      %941 = vmatpush.msra.mxu0 %v243
      %942 = vmatpush.msra.mxu0 %v228
      %943 = vmatpush.msra.mxu0 %v213
      %944 = vmatmul.f32.gmra.mxu0 %v724
      %v945 = vpop.f32.mrf.mxu0
      %v946 = vadd.f32 %v697, %v945
      %947 = vdwg.mxu0
      %948 = vmatpush.msra.mxu0 %v678
      %949 = vmatpush.msra.mxu0 %v663
      %950 = vmatpush.msra.mxu0 %v648
      %951 = vmatpush.msra.mxu0 %v633
      %952 = vmatpush.msra.mxu0 %v618
      %953 = vmatpush.msra.mxu0 %v603
      %954 = vmatpush.msra.mxu0 %v588
      %955 = vmatpush.msra.mxu0 %v573
      %956 = vmatpush.msra.mxu0 %v558
      %957 = vmatpush.msra.mxu0 %v543
      %958 = vmatpush.msra.mxu0 %v528
      %959 = vmatpush.msra.mxu0 %v513
      %960 = vmatpush.msra.mxu0 %v498
      %961 = vmatpush.msra.mxu0 %v483
      %962 = vmatpush.msra.mxu0 %v468
      %963 = vmatpush.msra.mxu0 %v453
      %964 = vmatmul.f32.gmra.mxu0 %v725
      %v965 = vpop.f32.mrf.mxu0
      %v966 = vadd.f32 %v946, %v965
      %967 = vdwg.mxu0
      %968 = vmatpush.msra.mxu0 %v439
      %969 = vmatpush.msra.mxu0 %v424
      %970 = vmatpush.msra.mxu0 %v409
      %971 = vmatpush.msra.mxu0 %v394
      %972 = vmatpush.msra.mxu0 %v379
      %973 = vmatpush.msra.mxu0 %v364
      %974 = vmatpush.msra.mxu0 %v349
      %975 = vmatpush.msra.mxu0 %v334
      %976 = vmatpush.msra.mxu0 %v319
      %977 = vmatpush.msra.mxu0 %v304
      %978 = vmatpush.msra.mxu0 %v289
      %979 = vmatpush.msra.mxu0 %v274
      %980 = vmatpush.msra.mxu0 %v259
      %981 = vmatpush.msra.mxu0 %v244
      %982 = vmatpush.msra.mxu0 %v229
      %983 = vmatpush.msra.mxu0 %v214
      %984 = vmatmul.f32.gmra.mxu0 %v724
      %v985 = vpop.f32.mrf.mxu0
      %v986 = vadd.f32 %v698, %v985
      %987 = vdwg.mxu0
      %988 = vmatpush.msra.mxu0 %v679
      %989 = vmatpush.msra.mxu0 %v664
      %990 = vmatpush.msra.mxu0 %v649
      %991 = vmatpush.msra.mxu0 %v634
      %992 = vmatpush.msra.mxu0 %v619
      %993 = vmatpush.msra.mxu0 %v604
      %994 = vmatpush.msra.mxu0 %v589
      %995 = vmatpush.msra.mxu0 %v574
      %996 = vmatpush.msra.mxu0 %v559
      %997 = vmatpush.msra.mxu0 %v544
      %998 = vmatpush.msra.mxu0 %v529
      %999 = vmatpush.msra.mxu0 %v514
      %1000 = vmatpush.msra.mxu0 %v499
      %1001 = vmatpush.msra.mxu0 %v484
      %1002 = vmatpush.msra.mxu0 %v469
      %1003 = vmatpush.msra.mxu0 %v454
      %1004 = vmatmul.f32.gmra.mxu0 %v725
      %v1005 = vpop.f32.mrf.mxu0
      %v1006 = vadd.f32 %v986, %v1005
      %1007 = vdwg.mxu0
      %1008 = vmatpush.msra.mxu0 %v440
      %1009 = vmatpush.msra.mxu0 %v425
      %1010 = vmatpush.msra.mxu0 %v410
      %1011 = vmatpush.msra.mxu0 %v395
      %1012 = vmatpush.msra.mxu0 %v380
      %1013 = vmatpush.msra.mxu0 %v365
      %1014 = vmatpush.msra.mxu0 %v350
      %1015 = vmatpush.msra.mxu0 %v335
      %1016 = vmatpush.msra.mxu0 %v320
      %1017 = vmatpush.msra.mxu0 %v305
      %1018 = vmatpush.msra.mxu0 %v290
      %1019 = vmatpush.msra.mxu0 %v275
      %1020 = vmatpush.msra.mxu0 %v260
      %1021 = vmatpush.msra.mxu0 %v245
      %1022 = vmatpush.msra.mxu0 %v230
      %1023 = vmatpush.msra.mxu0 %v215
      %1024 = vmatmul.f32.gmra.mxu0 %v724
      %v1025 = vpop.f32.mrf.mxu0
      %v1026 = vadd.f32 %v699, %v1025
      %1027 = vdwg.mxu0
      %1028 = vmatpush.msra.mxu0 %v680
      %1029 = vmatpush.msra.mxu0 %v665
      %1030 = vmatpush.msra.mxu0 %v650
      %1031 = vmatpush.msra.mxu0 %v635
      %1032 = vmatpush.msra.mxu0 %v620
      %1033 = vmatpush.msra.mxu0 %v605
      %1034 = vmatpush.msra.mxu0 %v590
      %1035 = vmatpush.msra.mxu0 %v575
      %1036 = vmatpush.msra.mxu0 %v560
      %1037 = vmatpush.msra.mxu0 %v545
      %1038 = vmatpush.msra.mxu0 %v530
      %1039 = vmatpush.msra.mxu0 %v515
      %1040 = vmatpush.msra.mxu0 %v500
      %1041 = vmatpush.msra.mxu0 %v485
      %1042 = vmatpush.msra.mxu0 %v470
      %1043 = vmatpush.msra.mxu0 %v455
      %1044 = vmatmul.f32.gmra.mxu0 %v725
      %v1045 = vpop.f32.mrf.mxu0
      %v1046 = vadd.f32 %v1026, %v1045
      %1047 = vdwg.mxu0
      %1048 = vmatpush.msra.mxu0 %v441
      %1049 = vmatpush.msra.mxu0 %v426
      %1050 = vmatpush.msra.mxu0 %v411
      %1051 = vmatpush.msra.mxu0 %v396
      %1052 = vmatpush.msra.mxu0 %v381
      %1053 = vmatpush.msra.mxu0 %v366
      %1054 = vmatpush.msra.mxu0 %v351
      %1055 = vmatpush.msra.mxu0 %v336
      %1056 = vmatpush.msra.mxu0 %v321
      %1057 = vmatpush.msra.mxu0 %v306
      %1058 = vmatpush.msra.mxu0 %v291
      %1059 = vmatpush.msra.mxu0 %v276
      %1060 = vmatpush.msra.mxu0 %v261
      %1061 = vmatpush.msra.mxu0 %v246
      %1062 = vmatpush.msra.mxu0 %v231
      %1063 = vmatpush.msra.mxu0 %v216
      %1064 = vmatmul.f32.gmra.mxu0 %v724
      %v1065 = vpop.f32.mrf.mxu0
      %v1066 = vadd.f32 %v700, %v1065
      %1067 = vdwg.mxu0
      %1068 = vmatpush.msra.mxu0 %v681
      %1069 = vmatpush.msra.mxu0 %v666
      %1070 = vmatpush.msra.mxu0 %v651
      %1071 = vmatpush.msra.mxu0 %v636
      %1072 = vmatpush.msra.mxu0 %v621
      %1073 = vmatpush.msra.mxu0 %v606
      %1074 = vmatpush.msra.mxu0 %v591
      %1075 = vmatpush.msra.mxu0 %v576
      %1076 = vmatpush.msra.mxu0 %v561
      %1077 = vmatpush.msra.mxu0 %v546
      %1078 = vmatpush.msra.mxu0 %v531
      %1079 = vmatpush.msra.mxu0 %v516
      %1080 = vmatpush.msra.mxu0 %v501
      %1081 = vmatpush.msra.mxu0 %v486
      %1082 = vmatpush.msra.mxu0 %v471
      %1083 = vmatpush.msra.mxu0 %v456
      %1084 = vmatmul.f32.gmra.mxu0 %v725
      %v1085 = vpop.f32.mrf.mxu0
      %v1086 = vadd.f32 %v1066, %v1085
      %1087 = vdwg.mxu0
      %1088 = vmatpush.msra.mxu0 %v442
      %1089 = vmatpush.msra.mxu0 %v427
      %1090 = vmatpush.msra.mxu0 %v412
      %1091 = vmatpush.msra.mxu0 %v397
      %1092 = vmatpush.msra.mxu0 %v382
      %1093 = vmatpush.msra.mxu0 %v367
      %1094 = vmatpush.msra.mxu0 %v352
      %1095 = vmatpush.msra.mxu0 %v337
      %1096 = vmatpush.msra.mxu0 %v322
      %1097 = vmatpush.msra.mxu0 %v307
      %1098 = vmatpush.msra.mxu0 %v292
      %1099 = vmatpush.msra.mxu0 %v277
      %1100 = vmatpush.msra.mxu0 %v262
      %1101 = vmatpush.msra.mxu0 %v247
      %1102 = vmatpush.msra.mxu0 %v232
      %1103 = vmatpush.msra.mxu0 %v217
      %1104 = vmatmul.f32.gmra.mxu0 %v724
      %v1105 = vpop.f32.mrf.mxu0
      %v1106 = vadd.f32 %v701, %v1105
      %1107 = vdwg.mxu0
      %1108 = vmatpush.msra.mxu0 %v682
      %1109 = vmatpush.msra.mxu0 %v667
      %1110 = vmatpush.msra.mxu0 %v652
      %1111 = vmatpush.msra.mxu0 %v637
      %1112 = vmatpush.msra.mxu0 %v622
      %1113 = vmatpush.msra.mxu0 %v607
      %1114 = vmatpush.msra.mxu0 %v592
      %1115 = vmatpush.msra.mxu0 %v577
      %1116 = vmatpush.msra.mxu0 %v562
      %1117 = vmatpush.msra.mxu0 %v547
      %1118 = vmatpush.msra.mxu0 %v532
      %1119 = vmatpush.msra.mxu0 %v517
      %1120 = vmatpush.msra.mxu0 %v502
      %1121 = vmatpush.msra.mxu0 %v487
      %1122 = vmatpush.msra.mxu0 %v472
      %1123 = vmatpush.msra.mxu0 %v457
      %1124 = vmatmul.f32.gmra.mxu0 %v725
      %v1125 = vpop.f32.mrf.mxu0
      %v1126 = vadd.f32 %v1106, %v1125
      %1127 = vdwg.mxu0
      %1128 = vmatpush.msra.mxu0 %v443
      %1129 = vmatpush.msra.mxu0 %v428
      %1130 = vmatpush.msra.mxu0 %v413
      %1131 = vmatpush.msra.mxu0 %v398
      %1132 = vmatpush.msra.mxu0 %v383
      %1133 = vmatpush.msra.mxu0 %v368
      %1134 = vmatpush.msra.mxu0 %v353
      %1135 = vmatpush.msra.mxu0 %v338
      %1136 = vmatpush.msra.mxu0 %v323
      %1137 = vmatpush.msra.mxu0 %v308
      %1138 = vmatpush.msra.mxu0 %v293
      %1139 = vmatpush.msra.mxu0 %v278
      %1140 = vmatpush.msra.mxu0 %v263
      %1141 = vmatpush.msra.mxu0 %v248
      %1142 = vmatpush.msra.mxu0 %v233
      %1143 = vmatpush.msra.mxu0 %v218
      %1144 = vmatmul.f32.gmra.mxu0 %v724
      %v1145 = vpop.f32.mrf.mxu0
      %v1146 = vadd.f32 %v702, %v1145
      %1147 = vdwg.mxu0
      %1148 = vmatpush.msra.mxu0 %v683
      %1149 = vmatpush.msra.mxu0 %v668
      %1150 = vmatpush.msra.mxu0 %v653
      %1151 = vmatpush.msra.mxu0 %v638
      %1152 = vmatpush.msra.mxu0 %v623
      %1153 = vmatpush.msra.mxu0 %v608
      %1154 = vmatpush.msra.mxu0 %v593
      %1155 = vmatpush.msra.mxu0 %v578
      %1156 = vmatpush.msra.mxu0 %v563
      %1157 = vmatpush.msra.mxu0 %v548
      %1158 = vmatpush.msra.mxu0 %v533
      %1159 = vmatpush.msra.mxu0 %v518
      %1160 = vmatpush.msra.mxu0 %v503
      %1161 = vmatpush.msra.mxu0 %v488
      %1162 = vmatpush.msra.mxu0 %v473
      %1163 = vmatpush.msra.mxu0 %v458
      %1164 = vmatmul.f32.gmra.mxu0 %v725
      %v1165 = vpop.f32.mrf.mxu0
      %v1166 = vadd.f32 %v1146, %v1165
      %1167 = vdwg.mxu0
      %1168 = vmatpush.msra.mxu0 %v444
      %1169 = vmatpush.msra.mxu0 %v429
      %1170 = vmatpush.msra.mxu0 %v414
      %1171 = vmatpush.msra.mxu0 %v399
      %1172 = vmatpush.msra.mxu0 %v384
      %1173 = vmatpush.msra.mxu0 %v369
      %1174 = vmatpush.msra.mxu0 %v354
      %1175 = vmatpush.msra.mxu0 %v339
      %1176 = vmatpush.msra.mxu0 %v324
      %1177 = vmatpush.msra.mxu0 %v309
      %1178 = vmatpush.msra.mxu0 %v294
      %1179 = vmatpush.msra.mxu0 %v279
      %1180 = vmatpush.msra.mxu0 %v264
      %1181 = vmatpush.msra.mxu0 %v249
      %1182 = vmatpush.msra.mxu0 %v234
      %1183 = vmatpush.msra.mxu0 %v219
      %1184 = vmatmul.f32.gmra.mxu0 %v724
      %v1185 = vpop.f32.mrf.mxu0
      %v1186 = vadd.f32 %v703, %v1185
      %1187 = vdwg.mxu0
      %1188 = vmatpush.msra.mxu0 %v684
      %1189 = vmatpush.msra.mxu0 %v669
      %1190 = vmatpush.msra.mxu0 %v654
      %1191 = vmatpush.msra.mxu0 %v639
      %1192 = vmatpush.msra.mxu0 %v624
      %1193 = vmatpush.msra.mxu0 %v609
      %1194 = vmatpush.msra.mxu0 %v594
      %1195 = vmatpush.msra.mxu0 %v579
      %1196 = vmatpush.msra.mxu0 %v564
      %1197 = vmatpush.msra.mxu0 %v549
      %1198 = vmatpush.msra.mxu0 %v534
      %1199 = vmatpush.msra.mxu0 %v519
      %1200 = vmatpush.msra.mxu0 %v504
      %1201 = vmatpush.msra.mxu0 %v489
      %1202 = vmatpush.msra.mxu0 %v474
      %1203 = vmatpush.msra.mxu0 %v459
      %1204 = vmatmul.f32.gmra.mxu0 %v725
      %v1205 = vpop.f32.mrf.mxu0
      %v1206 = vadd.f32 %v1186, %v1205
      %1207 = vdwg.mxu0
      %1208 = vmatpush.msra.mxu0 %v445
      %1209 = vmatpush.msra.mxu0 %v430
      %1210 = vmatpush.msra.mxu0 %v415
      %1211 = vmatpush.msra.mxu0 %v400
      %1212 = vmatpush.msra.mxu0 %v385
      %1213 = vmatpush.msra.mxu0 %v370
      %1214 = vmatpush.msra.mxu0 %v355
      %1215 = vmatpush.msra.mxu0 %v340
      %1216 = vmatpush.msra.mxu0 %v325
      %1217 = vmatpush.msra.mxu0 %v310
      %1218 = vmatpush.msra.mxu0 %v295
      %1219 = vmatpush.msra.mxu0 %v280
      %1220 = vmatpush.msra.mxu0 %v265
      %1221 = vmatpush.msra.mxu0 %v250
      %1222 = vmatpush.msra.mxu0 %v235
      %1223 = vmatpush.msra.mxu0 %v220
      %1224 = vmatmul.f32.gmra.mxu0 %v724
      %v1225 = vpop.f32.mrf.mxu0
      %v1226 = vadd.f32 %v704, %v1225
      %1227 = vdwg.mxu0
      %1228 = vmatpush.msra.mxu0 %v685
      %1229 = vmatpush.msra.mxu0 %v670
      %1230 = vmatpush.msra.mxu0 %v655
      %1231 = vmatpush.msra.mxu0 %v640
      %1232 = vmatpush.msra.mxu0 %v625
      %1233 = vmatpush.msra.mxu0 %v610
      %1234 = vmatpush.msra.mxu0 %v595
      %1235 = vmatpush.msra.mxu0 %v580
      %1236 = vmatpush.msra.mxu0 %v565
      %1237 = vmatpush.msra.mxu0 %v550
      %1238 = vmatpush.msra.mxu0 %v535
      %1239 = vmatpush.msra.mxu0 %v520
      %1240 = vmatpush.msra.mxu0 %v505
      %1241 = vmatpush.msra.mxu0 %v490
      %1242 = vmatpush.msra.mxu0 %v475
      %1243 = vmatpush.msra.mxu0 %v460
      %1244 = vmatmul.f32.gmra.mxu0 %v725
      %v1245 = vpop.f32.mrf.mxu0
      %v1246 = vadd.f32 %v1226, %v1245
      %1247 = vdwg.mxu0
      %1248 = vmatpush.msra.mxu0 %v446
      %1249 = vmatpush.msra.mxu0 %v431
      %1250 = vmatpush.msra.mxu0 %v416
      %1251 = vmatpush.msra.mxu0 %v401
      %1252 = vmatpush.msra.mxu0 %v386
      %1253 = vmatpush.msra.mxu0 %v371
      %1254 = vmatpush.msra.mxu0 %v356
      %1255 = vmatpush.msra.mxu0 %v341
      %1256 = vmatpush.msra.mxu0 %v326
      %1257 = vmatpush.msra.mxu0 %v311
      %1258 = vmatpush.msra.mxu0 %v296
      %1259 = vmatpush.msra.mxu0 %v281
      %1260 = vmatpush.msra.mxu0 %v266
      %1261 = vmatpush.msra.mxu0 %v251
      %1262 = vmatpush.msra.mxu0 %v236
      %1263 = vmatpush.msra.mxu0 %v221
      %1264 = vmatmul.f32.gmra.mxu0 %v724
      %v1265 = vpop.f32.mrf.mxu0
      %v1266 = vadd.f32 %v705, %v1265
      %1267 = vdwg.mxu0
      %1268 = vmatpush.msra.mxu0 %v686
      %1269 = vmatpush.msra.mxu0 %v671
      %1270 = vmatpush.msra.mxu0 %v656
      %1271 = vmatpush.msra.mxu0 %v641
      %1272 = vmatpush.msra.mxu0 %v626
      %1273 = vmatpush.msra.mxu0 %v611
      %1274 = vmatpush.msra.mxu0 %v596
      %1275 = vmatpush.msra.mxu0 %v581
      %1276 = vmatpush.msra.mxu0 %v566
      %1277 = vmatpush.msra.mxu0 %v551
      %1278 = vmatpush.msra.mxu0 %v536
      %1279 = vmatpush.msra.mxu0 %v521
      %1280 = vmatpush.msra.mxu0 %v506
      %1281 = vmatpush.msra.mxu0 %v491
      %1282 = vmatpush.msra.mxu0 %v476
      %1283 = vmatpush.msra.mxu0 %v461
      %1284 = vmatmul.f32.gmra.mxu0 %v725
      %v1285 = vpop.f32.mrf.mxu0
      %v1286 = vadd.f32 %v1266, %v1285
      %1287 = vdwg.mxu0
      %1288 = vmatpush.msra.mxu0 %v447
      %1289 = vmatpush.msra.mxu0 %v432
      %1290 = vmatpush.msra.mxu0 %v417
      %1291 = vmatpush.msra.mxu0 %v402
      %1292 = vmatpush.msra.mxu0 %v387
      %1293 = vmatpush.msra.mxu0 %v372
      %1294 = vmatpush.msra.mxu0 %v357
      %1295 = vmatpush.msra.mxu0 %v342
      %1296 = vmatpush.msra.mxu0 %v327
      %1297 = vmatpush.msra.mxu0 %v312
      %1298 = vmatpush.msra.mxu0 %v297
      %1299 = vmatpush.msra.mxu0 %v282
      %1300 = vmatpush.msra.mxu0 %v267
      %1301 = vmatpush.msra.mxu0 %v252
      %1302 = vmatpush.msra.mxu0 %v237
      %1303 = vmatpush.msra.mxu0 %v222
      %1304 = vmatmul.f32.gmra.mxu0 %v724
      %v1305 = vpop.f32.mrf.mxu0
      %v1306 = vadd.f32 %v706, %v1305
      %1307 = vdwg.mxu0
      %1308 = vmatpush.msra.mxu0 %v687
      %1309 = vmatpush.msra.mxu0 %v672
      %1310 = vmatpush.msra.mxu0 %v657
      %1311 = vmatpush.msra.mxu0 %v642
      %1312 = vmatpush.msra.mxu0 %v627
      %1313 = vmatpush.msra.mxu0 %v612
      %1314 = vmatpush.msra.mxu0 %v597
      %1315 = vmatpush.msra.mxu0 %v582
      %1316 = vmatpush.msra.mxu0 %v567
      %1317 = vmatpush.msra.mxu0 %v552
      %1318 = vmatpush.msra.mxu0 %v537
      %1319 = vmatpush.msra.mxu0 %v522
      %1320 = vmatpush.msra.mxu0 %v507
      %1321 = vmatpush.msra.mxu0 %v492
      %1322 = vmatpush.msra.mxu0 %v477
      %1323 = vmatpush.msra.mxu0 %v462
      %1324 = vmatmul.f32.gmra.mxu0 %v725
      %v1325 = vpop.f32.mrf.mxu0
      %v1326 = vadd.f32 %v1306, %v1325
      %1327 = vdwg.mxu0
      %v1342 = vrot.slane %v806, 4
      %v1343 = vrot.slane %v886, 4
      %v1344 = vrot.slane %v966, 4
      %v1345 = vrot.slane %v1046, 4
      %v1346 = vrot.slane %v1126, 4
      %v1347 = vrot.slane %v1206, 4
      %v1348 = vrot.slane %v1286, 4
      %vm1349 = vcmask 1043456
      %v1350 = vsel %vm1349, %v766, %v1342
      %v1351 = vsel %vm1349, %v846, %v1343
      %v1352 = vsel %vm1349, %v926, %v1344
      %v1353 = vsel %vm1349, %v1006, %v1345
      %v1354 = vsel %vm1349, %v1086, %v1346
      %v1355 = vsel %vm1349, %v1166, %v1347
      %v1356 = vsel %vm1349, %v1246, %v1348
      %1364 = vst [vmem:[%s206] sm:$0xff] %v1350
      %1365 = vst [vmem:[%s206 + $0x8] sm:$0xff] %v1351
      %1366 = vst [vmem:[%s206 + $0x10] sm:$0xff] %v1352
      %1367 = vst [vmem:[%s206 + $0x18] sm:$0xff] %v1353
      %1368 = vst [vmem:[%s206 + $0x20] sm:$0xff] %v1354
      %1369 = vst [vmem:[%s206 + $0x28] sm:$0xff] %v1355
      %1370 = vst [vmem:[%s206 + $0x30] sm:$0xff] %v1356
      %1371 = vst [vmem:[%s206 + $0x38] sm:$0xf] %v1326
      %p1372 = scmp.lt.s32.totalorder %s18, 1
      %s1373 = scalar_select %p1372, %s18, 1
      %p1374 = scmp.lt.s32.totalorder %s19, 0
      %s1375 = scalar_select %p1374, %s19, 0
      %s1376 = smul.addr %s1375, 15
      %s1377 = smul.addr %s1373, 15
      %s1378 = sadd.s32 %s1376, %s1377
      %s1379 = smul.addr %s1378, 4
      %s1380 = scalar_lea.vmem %s3, %s1379
      // Predicated region
      $region33: #{landmark_head_forward.1} parent=31 // pred_check
        %p1381 = pneg %p116
      $region34: #{landmark_head_forward.1} parent=31 // pred_check_branch
        %1383 = sbr.rel (%p1381) target = $region36
      $region35: #{landmark_head_forward.1} parent=31 // pred_region
        _
      $region36: #{landmark_head_forward.1} parent=31 // pred_fallthru
        _
    $region32: #{landmark_head_forward.1} parent=5 // pred_fallthru
      _
    %p1384 = scmp.le.s32.totalorder 2, %s9
    // Predicated region
    $region37: #{landmark_head_forward.1} parent=5 // pred_check
      %p1385 = pneg %p1384
    $region38: #{landmark_head_forward.1} parent=5 // pred_check_branch
      %1387 = sbr.rel (%p1385) target = $region40
    $region39: #{landmark_head_forward.1} parent=5 // pred_region
      %s1388 = ssub.s32 %s9, 2
      // Predicated region
      $region41: #{landmark_head_forward.1} parent=39 // pred_check
        %p1389 = pneg %p122
      $region42: #{landmark_head_forward.1} parent=39 // pred_check_branch
        %1391 = sbr.rel (%p1389) target = $region44
      $region43: #{landmark_head_forward.1} parent=39 // pred_region
        %p1392 = scmp.lt.s32.totalorder %s20, 1
        %s1393 = scalar_select %p1392, %s20, 1
        %p1394 = scmp.lt.s32.totalorder %s21, 0
        %s1395 = scalar_select %p1394, %s21, 0
        %s1396 = smul.addr %s1395, 15
        %s1397 = smul.addr %s1393, 15
        %s1398 = sadd.s32 %s1396, %s1397
        %s1399 = smul.addr %s1398, 4
        %s1400 = scalar_lea.vmem %s3, %s1399
      $region44: #{landmark_head_forward.1} parent=39 // pred_fallthru
        _
    $region40: #{landmark_head_forward.1} parent=5 // pred_fallthru
      _
  $region6: #{landmark_head_forward.1} parent=0 // loop_footer
    %s13 = sadd.s32 1, %s9
  $region7: #{landmark_head_forward.1} parent=0 // loop_footer_branch
    %8 = sbr.rel target = $region3
  $region8: #{landmark_head_forward.1} parent=0 // loop_exit
    _

</llo_original>
